<compile_context>
chip_gen: v7x
topology: tpu7x:2x2x1
jax: 0.10.0
libtpu: 0.0.40
codegen_flags: <defaults>
</compile_context>

<pallas_src>
import math
from functools import partial

import jax
import jax.numpy as jnp
import numpy as np
from jax.experimental import pallas as pl
from jax.experimental.pallas import tpu as pltpu


def _device_kind() -> str:
    try:
        return jax.devices()[0].device_kind.lower()
    except Exception:
        return ""


# ----------------------------- Pallas flash attention ----------------------------- #

def _flash_kernel(q_ref, k_ref, v_ref, o_ref, m_sc, l_sc, acc_sc, *, exp_dtype):
    """One grid step: one (rank, batch, head), one Q tile, one KV tile.

    Block shapes: q/o (1,1,1,Tq,D), k/v (1,1,1,Tk,D).
    Scratch (persists across the kv axis): m/l (Tq,1) f32, acc (Tq,D) f32."""
    ki = pl.program_id(4)

    @pl.when(ki == 0)
    def _():
        m_sc[...] = jnp.full_like(m_sc, -jnp.inf)
        l_sc[...] = jnp.zeros_like(l_sc)
        acc_sc[...] = jnp.zeros_like(acc_sc)

    q = q_ref[0, 0, 0]                                    # [Tq, D] (pre-scaled, bf16)
    k = k_ref[0, 0, 0]                                    # [Tk, D]
    v = v_ref[0, 0, 0]                                    # [Tk, D]

    # QK^T: contract on D directly (no materialized K transpose), f32 accumulation.
    # TODO(synk): check Mosaic dump for an XLU transpose of K; if present, feed K as
    # [.., D, S] from the wrapper instead.
    s = jax.lax.dot_general(q, k, (((1,), (1,)), ((), ())),
                            preferred_element_type=jnp.float32)       # [Tq, Tk]

    m_prev = m_sc[...]
    m_new = jnp.maximum(m_prev, jnp.max(s, axis=-1, keepdims=True))   # [Tq, 1]
    alpha = jnp.exp(m_prev - m_new)                                   # [Tq, 1] f32
    # exp in bf16 on v6e/v7x (EUP is the saturating slot at D>=128); l/acc stay f32.
    p = jnp.exp((s - m_new).astype(exp_dtype))                        # [Tq, Tk]
    l_sc[...] = alpha * l_sc[...] + jnp.sum(p, axis=-1, keepdims=True,
                                            dtype=jnp.float32)
    acc_sc[...] = alpha * acc_sc[...] + jax.lax.dot_general(
        p.astype(v.dtype), v, (((1,), (0,)), ((), ())),
        preferred_element_type=jnp.float32)                           # [Tq, D]
    m_sc[...] = m_new

    @pl.when(ki == pl.num_programs(4) - 1)
    def _():
        inv_l = pl.reciprocal(l_sc[...], approx=True)                 # EUP slot
        o_ref[0, 0, 0] = (acc_sc[...] * inv_l).astype(o_ref.dtype)


def _pick_tile(s, cap):
    """Largest divisor of s that is <= cap, preferring multiples of 128 (MXU/lane
    friendly) then 8 (sublane); otherwise the full extent."""
    cap = max(1, min(cap, s))
    for align in (128, 8):
        start = cap - cap % align
        for t in range(start, 0, -align):
            if s % t == 0:
                return t
    # TODO(synk): awkward S with no divisor that is a multiple of 8 -> full extent;
    # proper fix is a pl.cdiv grid with in-kernel masking.
    return s


def local_attention_pallas(q, k, v, *, scale=None, matmul_dtype=jnp.bfloat16,
                           out_dtype=None, q_tile=1024, kv_tile=512,
                           vmem_limit_bytes=32 * 1024 * 1024):
    """q, k, v: [R, B, H, S, D].  Returns [R, B, H, S, D] in out_dtype (default q.dtype).

    Non-causal scaled-dot-product attention per (rank, batch, head) with a flash-style
    online softmax over KV tiles.  Best performance when D is a multiple of 128
    (lane-dense loads/stores, full MXU rows); smaller D still lowers correctly."""
    R, B, H, S, D = q.shape
    if scale is None:
        scale = 1.0 / math.sqrt(D)
    if out_dtype is None:
        out_dtype = q.dtype

    tq = _pick_tile(S, q_tile)      # big tq: K/V are re-streamed nq = S/tq times
    tk = _pick_tile(S, kv_tile)
    nq, nk = S // tq, S // tk

    # bf16 MXU operands; fold any remaining softmax scale into the q cast pass.
    if q.dtype != matmul_dtype or scale != 1.0:
        q = (q.astype(jnp.float32) * scale).astype(matmul_dtype)
    if k.dtype != matmul_dtype:
        k = k.astype(matmul_dtype)
    if v.dtype != matmul_dtype:
        v = v.astype(matmul_dtype)

    kind = _device_kind()
    # bf16 exp only where the EUP supports it natively (v6e/v7x); f32 on v5*.
    exp_dtype = jnp.float32 if "v5" in kind else jnp.bfloat16
    # Only CORE_PARALLEL actually splits the grid across v7x's two TensorCores.
    lead_sem = pltpu.CORE_PARALLEL if "v7" in kind else pltpu.PARALLEL

    q_spec = pl.BlockSpec((1, 1, 1, tq, D), lambda r, b, h, qi, ki: (r, b, h, qi, 0))
    kv_spec = pl.BlockSpec((1, 1, 1, tk, D), lambda r, b, h, qi, ki: (r, b, h, ki, 0))
    o_spec = pl.BlockSpec((1, 1, 1, tq, D), lambda r, b, h, qi, ki: (r, b, h, qi, 0))

    in_b = jnp.dtype(matmul_dtype).itemsize
    out_b = jnp.dtype(out_dtype).itemsize
    cost = pl.CostEstimate(
        flops=4 * R * B * H * S * S * D,                  # QK^T + PV per head
        transcendentals=R * B * H * S * S,                # exp over the score matrix
        bytes_accessed=(R * B * H * S * D * (in_b + out_b)         # q + o once
                        + 2 * R * B * H * S * D * in_b * nq),      # k/v restreamed
    )

    return pl.pallas_call(
        partial(_flash_kernel, exp_dtype=exp_dtype),
        out_shape=jax.ShapeDtypeStruct((R, B, H, S, D), out_dtype),
        grid_spec=pltpu.PrefetchScalarGridSpec(
            num_scalar_prefetch=0,
            grid=(R, B, H, nq, nk),
            in_specs=[q_spec, kv_spec, kv_spec],
            out_specs=o_spec,
            scratch_shapes=[pltpu.VMEM((tq, 1), jnp.float32),    # running max
                            pltpu.VMEM((tq, 1), jnp.float32),    # running sum
                            pltpu.VMEM((tq, D), jnp.float32)],   # output accumulator
        ),
        compiler_params=pltpu.CompilerParams(
            dimension_semantics=(lead_sem, pltpu.PARALLEL, pltpu.PARALLEL,
                                 pltpu.PARALLEL, pltpu.ARBITRARY),
            vmem_limit_bytes=vmem_limit_bytes),
        cost_estimate=cost,
    )(q, k, v)


# ------------------- simulated all-to-all (exact single_all_to_all) ------------------ #

def _sim_single_all_to_all(x, scatter_idx, gather_idx, sp):
    """x: [sp, *inp_shape] — per-rank local tensors stacked on a leading rank axis.

    Reproduces single_all_to_all() exactly; dist.all_to_all_single is the
    rank<->chunk axis swap."""
    inp_shape = list(x.shape[1:])
    inp_shape[scatter_idx] = inp_shape[scatter_idx] // sp
    if scatter_idx < 2:
        input_t = x.reshape([sp, sp, inp_shape[scatter_idx]] + inp_shape[scatter_idx + 1:])
    else:
        input_t = x.reshape([sp, -1, sp, inp_shape[scatter_idx]] + inp_shape[scatter_idx + 1:])
        input_t = jnp.swapaxes(input_t, 1, 2)
    # dist.all_to_all_single: output[rank r][chunk j] = input_t[rank j][chunk r]
    output = jnp.swapaxes(input_t, 0, 1)
    if scatter_idx < 2:
        output = jnp.swapaxes(output, 1, 2)
        output = jnp.swapaxes(output, 2, 3)
    return output.reshape([sp] + inp_shape[:gather_idx]
                          + [inp_shape[gather_idx] * sp] + inp_shape[gather_idx + 1:])


# ----------------------------- DistributedAttention.forward -------------------------- #

def distributed_attention_forward(query, key, value, sp, scatter_idx=2, gather_idx=0,
                                  compute_dtype=jnp.bfloat16):
    """query/key/value: [sp, B, H, S_local, D] (per-rank shards stacked on axis 0).
    Returns [sp, B, S_local, H, D] in the input dtype (per-rank forward output)."""
    in_dtype = query.dtype
    origin_num_head = query.shape[2]
    D = query.shape[-1]
    scale = 1.0 / math.sqrt(D)

    # Cast to bf16 at the boundary so every reshape/transpose/a2a below moves half the
    # bytes; fold the softmax scale into q's cast pass (fuses, no extra HBM pass).
    query = (query * scale).astype(compute_dtype)
    key = key.astype(compute_dtype)
    value = value.astype(compute_dtype)

    # pad_attention_head: pad head dim to a multiple of sp (q/k with 0.01, v with 0.0)
    pad = (sp - origin_num_head % sp) % sp
    if pad > 0:
        padw = ((0, 0), (0, 0), (0, pad), (0, 0), (0, 0))
        query = jnp.pad(query, padw, constant_values=0.01)
        key = jnp.pad(key, padw, constant_values=0.01)
        value = jnp.pad(value, padw, constant_values=0.0)

    # per-rank [B,H,S,D] -> [S,B,H,D]  (transpose(1,2).transpose(0,1))
    to_sbhd = lambda t: jnp.transpose(t, (0, 3, 1, 2, 4))
    # a2a result [sp, S_full, B, H_local, D] -> per-rank [B, H_local, S_full, D]
    to_bhsd = lambda t: jnp.transpose(t, (0, 2, 3, 1, 4))
    a2a = lambda t: _sim_single_all_to_all(t, scatter_idx, gather_idx, sp)

    q_layer = to_bhsd(a2a(to_sbhd(query)))   # [sp, B, H_local, S_full, D]
    k_layer = to_bhsd(a2a(to_sbhd(key)))
    v_layer = to_bhsd(a2a(to_sbhd(value)))

    # local_attn (Pallas flash SDPA, one head per grid step); q already pre-scaled.
    context = local_attention_pallas(q_layer, k_layer, v_layer, scale=1.0)

    # -> [S_full, B, H_local, D] per rank for the reverse all-to-all (bf16 plumbing)
    context = jnp.transpose(context, (0, 3, 1, 2, 4))
    out = _sim_single_all_to_all(context, gather_idx, scatter_idx, sp)
    # per-rank transpose(0,1): [S_local, B, H_pad, D] -> [B, S_local, H_pad, D]
    out = jnp.transpose(out, (0, 2, 1, 3, 4))
    return out[:, :, :, :origin_num_head, :].astype(in_dtype)


# --------------------------------------- main ---------------------------------------- #

if __name__ == "__main__":
    # H=3 exercises the head-padding path; D=128 keeps the kernel lane/MXU dense.
    SP, B, H, S_LOCAL, D = 2, 2, 3, 128, 128
    S_FULL = SP * S_LOCAL

    k0 = jax.random.PRNGKey(0)
    kq, kk, kv = jax.random.split(k0, 3)
    q = jax.random.normal(kq, (SP, B, H, S_LOCAL, D), dtype=jnp.float32)
    k = jax.random.normal(kk, (SP, B, H, S_LOCAL, D), dtype=jnp.float32)
    v = jax.random.normal(kv, (SP, B, H, S_LOCAL, D), dtype=jnp.float32)

    fwd = jax.jit(lambda a, b, c: distributed_attention_forward(a, b, c, SP))
    out = jax.block_until_ready(fwd(q, k, v))
    assert out.shape == (SP, B, S_LOCAL, H, D), out.shape

    # pure-JAX f32 reference: gather sequence shards globally, full non-causal SDPA,
    # reshard back to per-rank [B, S_local, H, D].
    def reference(q, k, v):
        gather = lambda t: jnp.concatenate([t[r] for r in range(SP)], axis=2)  # [B,H,S_full,D]
        qg, kg, vg = gather(q), gather(k), gather(v)
        s = jnp.einsum("bhqd,bhkd->bhqk", qg, kg,
                       precision=jax.lax.Precision.HIGHEST) / math.sqrt(D)
        p = jax.nn.softmax(s, axis=-1)
        og = jnp.einsum("bhqk,bhkd->bhqd", p, vg,
                        precision=jax.lax.Precision.HIGHEST)      # [B, H, S_full, D]
        og = jnp.transpose(og, (0, 2, 1, 3))                      # [B, S_full, H, D]
        og = og.reshape(B, SP, S_LOCAL, H, D)
        return jnp.transpose(og, (1, 0, 2, 3, 4))                 # [sp, B, S_local, H, D]

    # bf16 matmul/exp path vs f32 reference -> bf16-level tolerance.
    np.testing.assert_allclose(np.asarray(out), np.asarray(reference(q, k, v)),
                               rtol=2e-2, atol=3e-2)
    print("KERNEL_OK")
</pallas_src>

<mosaic_0001>
module attributes {stable_mosaic.version = 11 : i64} {
  func.func @_flash_kernel(%arg0: i32, %arg1: i32, %arg2: i32, %arg3: i32, %arg4: i32, %arg5: memref<1x1x1x256x128xbf16, #tpu.memory_space<vmem>>, %arg6: memref<1x1x1x256x128xbf16, #tpu.memory_space<vmem>>, %arg7: memref<1x1x1x256x128xbf16, #tpu.memory_space<vmem>>, %arg8: memref<1x1x1x256x128xbf16, #tpu.memory_space<vmem>>, %arg9: memref<256x1xf32, #tpu.memory_space<vmem>>, %arg10: memref<256x1xf32, #tpu.memory_space<vmem>>, %arg11: memref<256x128xf32, #tpu.memory_space<vmem>>) attributes {dimension_semantics = [#tpu.dimension_semantics<parallel>, #tpu.dimension_semantics<parallel>, #tpu.dimension_semantics<parallel>, #tpu.dimension_semantics<parallel>, #tpu.dimension_semantics<arbitrary>], iteration_bounds = array<i64: 2, 2, 2, 1, 1>, scalar_prefetch = 0 : i64, scratch_operands = 3 : i64, tpu.core_type = #tpu.core_type<tc>, window_params = [{transform_indices = @transform_0, window_bounds = array<i64: 1, 1, 1, 256, 128>}, {transform_indices = @transform_1, window_bounds = array<i64: 1, 1, 1, 256, 128>}, {transform_indices = @transform_2, window_bounds = array<i64: 1, 1, 1, 256, 128>}, {transform_indices = @transform_3, window_bounds = array<i64: 1, 1, 1, 256, 128>}]} {
    %c0_i32 = arith.constant 0 : i32
    %0 = arith.cmpi eq, %arg4, %c0_i32 : i32
    %1 = arith.extui %0 : i1 to i32
    %c0_i32_0 = arith.constant 0 : i32
    %2 = arith.cmpi ne, %1, %c0_i32_0 : i32
    scf.if %2 {
      %cst_32 = arith.constant 0xFF800000 : f32
      %37 = vector.broadcast %cst_32 : f32 to vector<256x1xf32>
      %c0_33 = arith.constant 0 : index
      %c0_34 = arith.constant 0 : index
      %38 = vector.load %arg9[%c0_33, %c0_34] : memref<256x1xf32, #tpu.memory_space<vmem>>, vector<256x1xf32>
      tpu.vector_store %arg9[%c0_33, %c0_34], %37 {strides = array<i32>} : memref<256x1xf32, #tpu.memory_space<vmem>>, vector<256x1xf32>,
      %cst_35 = arith.constant 0.000000e+00 : f32
      %39 = vector.broadcast %cst_35 : f32 to vector<256x1xf32>
      %c0_36 = arith.constant 0 : index
      %c0_37 = arith.constant 0 : index
      %40 = vector.load %arg10[%c0_36, %c0_37] : memref<256x1xf32, #tpu.memory_space<vmem>>, vector<256x1xf32>
      tpu.vector_store %arg10[%c0_36, %c0_37], %39 {strides = array<i32>} : memref<256x1xf32, #tpu.memory_space<vmem>>, vector<256x1xf32>,
      %cst_38 = arith.constant 0.000000e+00 : f32
      %41 = vector.broadcast %cst_38 : f32 to vector<256x128xf32>
      %c0_39 = arith.constant 0 : index
      %c0_40 = arith.constant 0 : index
      %42 = vector.load %arg11[%c0_39, %c0_40] : memref<256x128xf32, #tpu.memory_space<vmem>>, vector<256x128xf32>
      tpu.vector_store %arg11[%c0_39, %c0_40], %41 {strides = array<i32>} : memref<256x128xf32, #tpu.memory_space<vmem>>, vector<256x128xf32>,
    } else {
    }
    %c0 = arith.constant 0 : index
    %c0_1 = arith.constant 0 : index
    %c0_2 = arith.constant 0 : index
    %c0_3 = arith.constant 0 : index
    %c0_4 = arith.constant 0 : index
    %3 = vector.load %arg5[%c0, %c0_1, %c0_2, %c0_3, %c0_4] : memref<1x1x1x256x128xbf16, #tpu.memory_space<vmem>>, vector<1x1x1x256x128xbf16>
    %4 = vector.shape_cast %3 : vector<1x1x1x256x128xbf16> to vector<256x128xbf16>
    %c0_5 = arith.constant 0 : index
    %c0_6 = arith.constant 0 : index
    %c0_7 = arith.constant 0 : index
    %c0_8 = arith.constant 0 : index
    %c0_9 = arith.constant 0 : index
    %5 = vector.load %arg6[%c0_5, %c0_6, %c0_7, %c0_8, %c0_9] : memref<1x1x1x256x128xbf16, #tpu.memory_space<vmem>>, vector<1x1x1x256x128xbf16>
    %6 = vector.shape_cast %5 : vector<1x1x1x256x128xbf16> to vector<256x128xbf16>
    %c0_10 = arith.constant 0 : index
    %c0_11 = arith.constant 0 : index
    %c0_12 = arith.constant 0 : index
    %c0_13 = arith.constant 0 : index
    %c0_14 = arith.constant 0 : index
    %7 = vector.load %arg7[%c0_10, %c0_11, %c0_12, %c0_13, %c0_14] : memref<1x1x1x256x128xbf16, #tpu.memory_space<vmem>>, vector<1x1x1x256x128xbf16>
    %8 = vector.shape_cast %7 : vector<1x1x1x256x128xbf16> to vector<256x128xbf16>
    %cst = arith.constant dense<0.000000e+00> : vector<256x256xf32>
    %9 = tpu.matmul %4, %6, %cst {dimension_numbers = #tpu.dot_dimension_numbers<[1], [1], [0], [0], [0, 0, 1, 0], [], []>} : vector<256x128xbf16>, vector<256x128xbf16>, vector<256x256xf32> -> vector<256x256xf32>
    %c0_15 = arith.constant 0 : index
    %c0_16 = arith.constant 0 : index
    %10 = vector.load %arg9[%c0_15, %c0_16] : memref<256x1xf32, #tpu.memory_space<vmem>>, vector<256x1xf32>
    %cst_17 = arith.constant dense<0xFF800000> : vector<256xf32>
    %11 = vector.multi_reduction <maximumf>, %9, %cst_17 [1] : vector<256x256xf32> to vector<256xf32>
    %12 = vector.shape_cast %11 : vector<256xf32> to vector<256x1xf32>
    %13 = arith.maximumf %10, %12 : vector<256x1xf32>
    %14 = arith.subf %10, %13 : vector<256x1xf32>
    %15 = math.exp %14 : vector<256x1xf32>
    %16 = vector.broadcast %13 : vector<256x1xf32> to vector<256x256xf32>
    %17 = arith.subf %9, %16 : vector<256x256xf32>
    %18 = arith.truncf %17 : vector<256x256xf32> to vector<256x256xbf16>
    %19 = math.exp %18 : vector<256x256xbf16>
    %c0_18 = arith.constant 0 : index
    %c0_19 = arith.constant 0 : index
    %20 = vector.load %arg10[%c0_18, %c0_19] : memref<256x1xf32, #tpu.memory_space<vmem>>, vector<256x1xf32>
    %21 = arith.mulf %15, %20 : vector<256x1xf32>
    %22 = arith.extf %19 : vector<256x256xbf16> to vector<256x256xf32>
    %cst_20 = arith.constant dense<0.000000e+00> : vector<256xf32>
    %23 = vector.multi_reduction <add>, %22, %cst_20 [1] : vector<256x256xf32> to vector<256xf32>
    %24 = vector.shape_cast %23 : vector<256xf32> to vector<256x1xf32>
    %25 = arith.addf %21, %24 : vector<256x1xf32>
    %c0_21 = arith.constant 0 : index
    %c0_22 = arith.constant 0 : index
    %26 = vector.load %arg10[%c0_21, %c0_22] : memref<256x1xf32, #tpu.memory_space<vmem>>, vector<256x1xf32>
    tpu.vector_store %arg10[%c0_21, %c0_22], %25 {strides = array<i32>} : memref<256x1xf32, #tpu.memory_space<vmem>>, vector<256x1xf32>,
    %c0_23 = arith.constant 0 : index
    %c0_24 = arith.constant 0 : index
    %27 = vector.load %arg11[%c0_23, %c0_24] : memref<256x128xf32, #tpu.memory_space<vmem>>, vector<256x128xf32>
    %28 = vector.broadcast %15 : vector<256x1xf32> to vector<256x128xf32>
    %29 = arith.mulf %28, %27 : vector<256x128xf32>
    %cst_25 = arith.constant dense<0.000000e+00> : vector<256x128xf32>
    %30 = tpu.matmul %19, %8, %cst_25 {dimension_numbers = #tpu.dot_dimension_numbers<[1], [0], [0], [1], [0, 0, 1, 1], [], []>} : vector<256x256xbf16>, vector<256x128xbf16>, vector<256x128xf32> -> vector<256x128xf32>
    %31 = arith.addf %29, %30 : vector<256x128xf32>
    %c0_26 = arith.constant 0 : index
    %c0_27 = arith.constant 0 : index
    %32 = vector.load %arg11[%c0_26, %c0_27] : memref<256x128xf32, #tpu.memory_space<vmem>>, vector<256x128xf32>
    tpu.vector_store %arg11[%c0_26, %c0_27], %31 {strides = array<i32>} : memref<256x128xf32, #tpu.memory_space<vmem>>, vector<256x128xf32>,
    %c0_28 = arith.constant 0 : index
    %c0_29 = arith.constant 0 : index
    %33 = vector.load %arg9[%c0_28, %c0_29] : memref<256x1xf32, #tpu.memory_space<vmem>>, vector<256x1xf32>
    tpu.vector_store %arg9[%c0_28, %c0_29], %13 {strides = array<i32>} : memref<256x1xf32, #tpu.memory_space<vmem>>, vector<256x1xf32>,
    %c0_i32_30 = arith.constant 0 : i32
    %34 = arith.cmpi eq, %arg4, %c0_i32_30 : i32
    %35 = arith.extui %34 : i1 to i32
    %c0_i32_31 = arith.constant 0 : i32
    %36 = arith.cmpi ne, %35, %c0_i32_31 : i32
    scf.if %36 {
      %c0_32 = arith.constant 0 : index
      %c0_33 = arith.constant 0 : index
      %37 = vector.load %arg10[%c0_32, %c0_33] : memref<256x1xf32, #tpu.memory_space<vmem>>, vector<256x1xf32>
      %38 = tpu.reciprocal %37 {approx = true} : vector<256x1xf32> -> vector<256x1xf32>
      %c0_34 = arith.constant 0 : index
      %c0_35 = arith.constant 0 : index
      %39 = vector.load %arg11[%c0_34, %c0_35] : memref<256x128xf32, #tpu.memory_space<vmem>>, vector<256x128xf32>
      %40 = vector.broadcast %38 : vector<256x1xf32> to vector<256x128xf32>
      %41 = arith.mulf %39, %40 : vector<256x128xf32>
      %42 = arith.truncf %41 : vector<256x128xf32> to vector<256x128xbf16>
      %c0_36 = arith.constant 0 : index
      %c0_37 = arith.constant 0 : index
      %c0_38 = arith.constant 0 : index
      %c0_39 = arith.constant 0 : index
      %c0_40 = arith.constant 0 : index
      %43 = vector.load %arg8[%c0_36, %c0_37, %c0_38, %c0_39, %c0_40] : memref<1x1x1x256x128xbf16, #tpu.memory_space<vmem>>, vector<1x1x1x256x128xbf16>
      %44 = vector.shape_cast %43 : vector<1x1x1x256x128xbf16> to vector<256x128xbf16>
      %45 = vector.shape_cast %42 : vector<256x128xbf16> to vector<1x1x1x256x128xbf16>
      tpu.vector_store %arg8[%c0_36, %c0_37, %c0_38, %c0_39, %c0_40], %45 {strides = array<i32>} : memref<1x1x1x256x128xbf16, #tpu.memory_space<vmem>>, vector<1x1x1x256x128xbf16>,
    } else {
    }
    return
  }
  func.func @transform_0(%arg0: i32, %arg1: i32, %arg2: i32, %arg3: i32, %arg4: i32) -> (i32, i32, i32, i32, i32) {
    %c0_i32 = arith.constant 0 : i32
    %c0_i32_0 = arith.constant 0 : i32
    return %arg0, %arg1, %arg2, %arg3, %c0_i32 : i32, i32, i32, i32, i32
  }
  func.func @transform_1(%arg0: i32, %arg1: i32, %arg2: i32, %arg3: i32, %arg4: i32) -> (i32, i32, i32, i32, i32) {
    %c0_i32 = arith.constant 0 : i32
    %c0_i32_0 = arith.constant 0 : i32
    return %arg0, %arg1, %arg2, %arg4, %c0_i32 : i32, i32, i32, i32, i32
  }
  func.func @transform_2(%arg0: i32, %arg1: i32, %arg2: i32, %arg3: i32, %arg4: i32) -> (i32, i32, i32, i32, i32) {
    %c0_i32 = arith.constant 0 : i32
    %c0_i32_0 = arith.constant 0 : i32
    return %arg0, %arg1, %arg2, %arg4, %c0_i32 : i32, i32, i32, i32, i32
  }
  func.func @transform_3(%arg0: i32, %arg1: i32, %arg2: i32, %arg3: i32, %arg4: i32) -> (i32, i32, i32, i32, i32) {
    %c0_i32 = arith.constant 0 : i32
    %c0_i32_0 = arith.constant 0 : i32
    return %arg0, %arg1, %arg2, %arg3, %c0_i32 : i32, i32, i32, i32, i32
  }
}

</mosaic_0001>

<llo_original>
// kernel: _lambda_.1
$region0: #{_lambda_.1}
  #allocation0 [shape = 'u32[]', space=smem, size = 0x4, offset = 0x4, fixed_abs, tag = 'smem constant byte address 0x4 - core index']
  #allocation1 [shape = 'u32[144,128]{1,0:T(1,128)}', space=vmem, size = 0x12000, scoped, tag = 'internal scratch']
  #allocation2 [shape = 'f32[256,1]{1,0:T(8,128)}', space=vmem, size = 0x20000, scoped, tag = 'scratch operand']
  #allocation3 [shape = 'f32[256,1]{1,0:T(8,128)}', space=vmem, size = 0x20000, scoped, tag = 'scratch operand']
  #allocation4 [shape = 'f32[256,128]{1,0:T(8,128)}', space=vmem, size = 0x20000, scoped, tag = 'scratch operand']
  %s0 = inlined_call_operand.vmem [shape: bf16[2,2,2,256,128], index: 0, kind: input, shape index: {}]
  %s1 = inlined_call_operand.vmem [shape: bf16[2,2,2,256,128], index: 1, kind: input, shape index: {}]
  %s2 = inlined_call_operand.vmem [shape: bf16[2,2,2,256,128], index: 2, kind: input, shape index: {}]
  %s3 = inlined_call_operand.vmem [shape: bf16[2,2,2,256,128], index: 3, kind: output, shape index: {}]
  %s4 = sld [smem:[#allocation0]]
  $region53: #{_lambda_.1} parent=0
    _
  %s6 = ssub.s32 1, %s4
  %s7 = scalar_select 0, %s6, %s4
  loop: start=0, step=1, limit=10
  $region2: #{_lambda_.1} parent=0 // loop_pre_header
    _
  $region3: #{_lambda_.1} parent=0 // loop_header
    %s9 = sphi 0, %s13
    %p10 = scmp.ge.s32.totalorder %s9, 10
    %s16 = sphi 0, %s49
    %s17 = sphi 0, %s45
    %s18 = sphi 0, %s41
    %s19 = sphi 0, %s37
    %s20 = sphi 0, %s33
    %s21 = sphi 0, %s16
    %s22 = sphi 0, %s17
    %s23 = sphi 0, %s18
    %s24 = sphi 0, %s19
    %s25 = sphi 0, %s20
    %s26 = sphi 0, %s21
    %s27 = sphi 0, %s22
    %s28 = sphi 0, %s23
    %s29 = sphi 0, %s24
    %s30 = sphi 0, %s25
    %s58 = sphi 0, %s60
    %s61 = sphi 0, %s58
    %s62 = sphi 0, %s61
    %s78 = sphi 0, %s62
    %s90 = sphi 0, %s92
    %s93 = sphi 0, %s90
    %s94 = sphi 0, %s93
    %s110 = sphi 0, %s94
    %s122 = sphi 0, %s124
    %s125 = sphi 0, %s122
    %s126 = sphi 0, %s125
    %s142 = sphi 0, %s126
    %s154 = sphi 0, %s156
    %s157 = sphi 0, %s154
    %s158 = sphi 0, %s157
    %s174 = sphi 0, %s158
  $region4: #{_lambda_.1} parent=0 // loop_header_branch
    %12 = sbr.rel (%p10) target = $region8
  $region5: #{_lambda_.1} parent=0 // loop_body
    %s14 = ssub.s32 %s9, 1
    %s15 = ssub.s32 %s9, 2
    %s31 = sadd.s32 1, %s20
    %p32 = scmp.ge.s32.totalorder %s31, 1
    %s33 = scalar_select %p32, 0, %s31
    %s34 = sadd.s32 1, %s19
    %s35 = scalar_select %p32, %s34, %s19
    %p36 = scmp.ge.s32.totalorder %s35, 1
    %s37 = scalar_select %p36, 0, %s35
    %s38 = sadd.s32 1, %s18
    %s39 = scalar_select %p36, %s38, %s18
    %p40 = scmp.ge.s32.totalorder %s39, 2
    %s41 = scalar_select %p40, 0, %s39
    %s42 = sadd.s32 1, %s17
    %s43 = scalar_select %p40, %s42, %s17
    %p44 = scmp.ge.s32.totalorder %s43, 2
    %s45 = scalar_select %p44, 0, %s43
    %s46 = sadd.s32 1, %s16
    %s47 = scalar_select %p44, %s46, %s16
    %p48 = scmp.ge.s32.totalorder %s47, 2
    %s49 = scalar_select %p48, 0, %s47
    %s50 = ssub.s32 %s16, %s49
    %s51 = ssub.s32 %s17, %s45
    %s52 = sor.u32 %s50, %s51
    %s53 = ssub.s32 %s18, %s41
    %s54 = sor.u32 %s52, %s53
    %s55 = ssub.s32 %s19, %s37
    %s56 = sor.u32 %s54, %s55
    %p57 = scmp.eq.s32.totalorder %s56, 0
    %s59 = sadd.s32 %s58, 1
    %s60 = scalar_select %p57, %s58, %s59
    %p63 = pneg %p57
    %p64 = scmp.eq.s32.totalorder %s9, 7
    %p65 = por %p63, %p64
    %p66 = scmp.ne.s32.totalorder %s58, %s61
    %p67 = scmp.eq.s32.totalorder %s9, 0
    %p68 = por %p66, %p67
    %p69 = scmp.ne.s32.totalorder %s58, %s61
    %p70 = scmp.eq.s32.totalorder %s14, 7
    %p71 = por %p69, %p70
    %p72 = scmp.ne.s32.totalorder %s61, %s62
    %p73 = scmp.eq.s32.totalorder %s14, 0
    %p74 = por %p72, %p73
    %p75 = scmp.ne.s32.totalorder %s61, %s62
    %p76 = scmp.eq.s32.totalorder %s15, 7
    %p77 = por %p75, %p76
    %p79 = scmp.ne.s32.totalorder %s62, %s78
    %p80 = scmp.eq.s32.totalorder %s15, 0
    %p81 = por %p79, %p80
    %s82 = ssub.s32 %s16, %s49
    %s83 = ssub.s32 %s17, %s45
    %s84 = sor.u32 %s82, %s83
    %s85 = ssub.s32 %s18, %s41
    %s86 = sor.u32 %s84, %s85
    %s87 = ssub.s32 %s20, %s33
    %s88 = sor.u32 %s86, %s87
    %p89 = scmp.eq.s32.totalorder %s88, 0
    %s91 = sadd.s32 %s90, 1
    %s92 = scalar_select %p89, %s90, %s91
    %p95 = pneg %p89
    %p96 = scmp.eq.s32.totalorder %s9, 7
    %p97 = por %p95, %p96
    %p98 = scmp.ne.s32.totalorder %s90, %s93
    %p99 = scmp.eq.s32.totalorder %s9, 0
    %p100 = por %p98, %p99
    %p101 = scmp.ne.s32.totalorder %s90, %s93
    %p102 = scmp.eq.s32.totalorder %s14, 7
    %p103 = por %p101, %p102
    %p104 = scmp.ne.s32.totalorder %s93, %s94
    %p105 = scmp.eq.s32.totalorder %s14, 0
    %p106 = por %p104, %p105
    %p107 = scmp.ne.s32.totalorder %s93, %s94
    %p108 = scmp.eq.s32.totalorder %s15, 7
    %p109 = por %p107, %p108
    %p111 = scmp.ne.s32.totalorder %s94, %s110
    %p112 = scmp.eq.s32.totalorder %s15, 0
    %p113 = por %p111, %p112
    %s114 = ssub.s32 %s16, %s49
    %s115 = ssub.s32 %s17, %s45
    %s116 = sor.u32 %s114, %s115
    %s117 = ssub.s32 %s18, %s41
    %s118 = sor.u32 %s116, %s117
    %s119 = ssub.s32 %s20, %s33
    %s120 = sor.u32 %s118, %s119
    %p121 = scmp.eq.s32.totalorder %s120, 0
    %s123 = sadd.s32 %s122, 1
    %s124 = scalar_select %p121, %s122, %s123
    %p127 = pneg %p121
    %p128 = scmp.eq.s32.totalorder %s9, 7
    %p129 = por %p127, %p128
    %p130 = scmp.ne.s32.totalorder %s122, %s125
    %p131 = scmp.eq.s32.totalorder %s9, 0
    %p132 = por %p130, %p131
    %p133 = scmp.ne.s32.totalorder %s122, %s125
    %p134 = scmp.eq.s32.totalorder %s14, 7
    %p135 = por %p133, %p134
    %p136 = scmp.ne.s32.totalorder %s125, %s126
    %p137 = scmp.eq.s32.totalorder %s14, 0
    %p138 = por %p136, %p137
    %p139 = scmp.ne.s32.totalorder %s125, %s126
    %p140 = scmp.eq.s32.totalorder %s15, 7
    %p141 = por %p139, %p140
    %p143 = scmp.ne.s32.totalorder %s126, %s142
    %p144 = scmp.eq.s32.totalorder %s15, 0
    %p145 = por %p143, %p144
    %s146 = ssub.s32 %s16, %s49
    %s147 = ssub.s32 %s17, %s45
    %s148 = sor.u32 %s146, %s147
    %s149 = ssub.s32 %s18, %s41
    %s150 = sor.u32 %s148, %s149
    %s151 = ssub.s32 %s19, %s37
    %s152 = sor.u32 %s150, %s151
    %p153 = scmp.eq.s32.totalorder %s152, 0
    %s155 = sadd.s32 %s154, 1
    %s156 = scalar_select %p153, %s154, %s155
    %p159 = pneg %p153
    %p160 = scmp.eq.s32.totalorder %s9, 7
    %p161 = por %p159, %p160
    %p162 = scmp.ne.s32.totalorder %s154, %s157
    %p163 = scmp.eq.s32.totalorder %s9, 0
    %p164 = por %p162, %p163
    %p165 = scmp.ne.s32.totalorder %s154, %s157
    %p166 = scmp.eq.s32.totalorder %s14, 7
    %p167 = por %p165, %p166
    %p168 = scmp.ne.s32.totalorder %s157, %s158
    %p169 = scmp.eq.s32.totalorder %s14, 0
    %p170 = por %p168, %p169
    %p171 = scmp.ne.s32.totalorder %s157, %s158
    %p172 = scmp.eq.s32.totalorder %s15, 7
    %p173 = por %p171, %p172
    %p175 = scmp.ne.s32.totalorder %s158, %s174
    %p176 = scmp.eq.s32.totalorder %s15, 0
    %p177 = por %p175, %p176
    %p178 = scmp.le.s32.totalorder 1, %s9
    %p179 = scmp.lt.s32.totalorder %s9, 9
    %p180 = pnand %p178, %p179
    %p181 = pneg %p180
    // Predicated region
    $region9: #{_lambda_.1} parent=5 // pred_check
      _
    $region10: #{_lambda_.1} parent=5 // pred_check_branch
      %183 = sbr.rel (%p180) target = $region12
    $region11: #{_lambda_.1} parent=5 // pred_region
      %s184 = ssub.s32 %s9, 1
    $region12: #{_lambda_.1} parent=5 // pred_fallthru
      _
    %p185 = scmp.lt.s32.totalorder %s9, 8
    // Predicated region
    $region13: #{_lambda_.1} parent=5 // pred_check
      %p186 = pneg %p185
    $region14: #{_lambda_.1} parent=5 // pred_check_branch
      %188 = sbr.rel (%p186) target = $region16
    $region15: #{_lambda_.1} parent=5 // pred_region
      // Predicated region
      $region17: #{_lambda_.1} parent=15 // pred_check
        %p189 = pneg %p68
      $region18: #{_lambda_.1} parent=15 // pred_check_branch
        %191 = sbr.rel (%p189) target = $region20
      $region19: #{_lambda_.1} parent=15 // pred_region
        %s192 = smul.u32 32, %s19
        %p193 = scmp.lt.s32.totalorder %s16, 1
        %s194 = scalar_select %p193, %s16, 1
        %p195 = scmp.lt.s32.totalorder %s17, 1
        %s196 = scalar_select %p195, %s17, 1
        %p197 = scmp.lt.s32.totalorder %s18, 1
        %s198 = scalar_select %p197, %s18, 1
        %p199 = scmp.lt.s32.totalorder %s192, 31
        %s200 = scalar_select %p199, %s192, 31
        %s201 = smul.addr %s198, 32
        %s202 = sadd.s32 %s200, %s201
        %s203 = smul.addr %s196, 64
        %s204 = sadd.s32 %s202, %s203
        %s205 = smul.addr %s194, 128
        %s206 = sadd.s32 %s204, %s205
        %s207 = smul.addr %s206, 4
        %s208 = scalar_lea.vmem %s0, %s207
        %s209 = smul.u32 32, %s19
      $region20: #{_lambda_.1} parent=15 // pred_fallthru
        _
      // Predicated region
      $region21: #{_lambda_.1} parent=15 // pred_check
        %p210 = pneg %p100
      $region22: #{_lambda_.1} parent=15 // pred_check_branch
        %212 = sbr.rel (%p210) target = $region24
      $region23: #{_lambda_.1} parent=15 // pred_region
        %s213 = smul.u32 32, %s20
        %p214 = scmp.lt.s32.totalorder %s16, 1
        %s215 = scalar_select %p214, %s16, 1
        %p216 = scmp.lt.s32.totalorder %s17, 1
        %s217 = scalar_select %p216, %s17, 1
        %p218 = scmp.lt.s32.totalorder %s18, 1
        %s219 = scalar_select %p218, %s18, 1
        %p220 = scmp.lt.s32.totalorder %s213, 31
        %s221 = scalar_select %p220, %s213, 31
        %s222 = smul.addr %s219, 32
        %s223 = sadd.s32 %s221, %s222
        %s224 = smul.addr %s217, 64
        %s225 = sadd.s32 %s223, %s224
        %s226 = smul.addr %s215, 128
        %s227 = sadd.s32 %s225, %s226
        %s228 = smul.addr %s227, 4
        %s229 = scalar_lea.vmem %s1, %s228
        %s230 = smul.u32 32, %s20
      $region24: #{_lambda_.1} parent=15 // pred_fallthru
        _
      // Predicated region
      $region25: #{_lambda_.1} parent=15 // pred_check
        %p231 = pneg %p132
      $region26: #{_lambda_.1} parent=15 // pred_check_branch
        %233 = sbr.rel (%p231) target = $region28
      $region27: #{_lambda_.1} parent=15 // pred_region
        %s234 = smul.u32 32, %s20
        %p235 = scmp.lt.s32.totalorder %s16, 1
        %s236 = scalar_select %p235, %s16, 1
        %p237 = scmp.lt.s32.totalorder %s17, 1
        %s238 = scalar_select %p237, %s17, 1
        %p239 = scmp.lt.s32.totalorder %s18, 1
        %s240 = scalar_select %p239, %s18, 1
        %p241 = scmp.lt.s32.totalorder %s234, 31
        %s242 = scalar_select %p241, %s234, 31
        %s243 = smul.addr %s240, 32
        %s244 = sadd.s32 %s242, %s243
        %s245 = smul.addr %s238, 64
        %s246 = sadd.s32 %s244, %s245
        %s247 = smul.addr %s236, 128
        %s248 = sadd.s32 %s246, %s247
        %s249 = smul.addr %s248, 4
        %s250 = scalar_lea.vmem %s2, %s249
        %s251 = smul.u32 32, %s20
      $region28: #{_lambda_.1} parent=15 // pred_fallthru
        _
    $region16: #{_lambda_.1} parent=5 // pred_fallthru
      _
    %p252 = scmp.le.s32.totalorder 1, %s9
    %p253 = scmp.lt.s32.totalorder %s9, 9
    %p254 = pnand %p252, %p253
    %p255 = pneg %p254
    // Predicated region
    $region29: #{_lambda_.1} parent=5 // pred_check
      _
    $region30: #{_lambda_.1} parent=5 // pred_check_branch
      %257 = sbr.rel (%p254) target = $region32
    $region31: #{_lambda_.1} parent=5 // pred_region
      %s258 = ssub.s32 %s9, 1
      %s259 = smul.u32 32, %s24
      %p260 = scmp.lt.s32.totalorder %s21, 1
      %s261 = scalar_select %p260, %s21, 1
      %p262 = scmp.lt.s32.totalorder %s22, 1
      %s263 = scalar_select %p262, %s22, 1
      %p264 = scmp.lt.s32.totalorder %s23, 1
      %s265 = scalar_select %p264, %s23, 1
      %p266 = scmp.lt.s32.totalorder %s259, 31
      %s267 = scalar_select %p266, %s259, 31
      %s268 = smul.addr %s265, 32
      %s269 = sadd.s32 %s267, %s268
      %s270 = smul.addr %s263, 64
      %s271 = sadd.s32 %s269, %s270
      %s272 = smul.addr %s261, 128
      %s273 = sadd.s32 %s271, %s272
      %s274 = smul.addr %s273, 4
      %s275 = scalar_lea.vmem %s0, %s274
      %p276 = pneg %p74
      %p277 = pneg %p71
      %s278 = smul.u32 32, %s25
      %p279 = scmp.lt.s32.totalorder %s21, 1
      %s280 = scalar_select %p279, %s21, 1
      %p281 = scmp.lt.s32.totalorder %s22, 1
      %s282 = scalar_select %p281, %s22, 1
      %p283 = scmp.lt.s32.totalorder %s23, 1
      %s284 = scalar_select %p283, %s23, 1
      %p285 = scmp.lt.s32.totalorder %s278, 31
      %s286 = scalar_select %p285, %s278, 31
      %s287 = smul.addr %s284, 32
      %s288 = sadd.s32 %s286, %s287
      %s289 = smul.addr %s282, 64
      %s290 = sadd.s32 %s288, %s289
      %s291 = smul.addr %s280, 128
      %s292 = sadd.s32 %s290, %s291
      %s293 = smul.addr %s292, 4
      %s294 = scalar_lea.vmem %s1, %s293
      %p295 = pneg %p106
      %p296 = pneg %p103
      %s297 = smul.u32 32, %s25
      %p298 = scmp.lt.s32.totalorder %s21, 1
      %s299 = scalar_select %p298, %s21, 1
      %p300 = scmp.lt.s32.totalorder %s22, 1
      %s301 = scalar_select %p300, %s22, 1
      %p302 = scmp.lt.s32.totalorder %s23, 1
      %s303 = scalar_select %p302, %s23, 1
      %p304 = scmp.lt.s32.totalorder %s297, 31
      %s305 = scalar_select %p304, %s297, 31
      %s306 = smul.addr %s303, 32
      %s307 = sadd.s32 %s305, %s306
      %s308 = smul.addr %s301, 64
      %s309 = sadd.s32 %s307, %s308
      %s310 = smul.addr %s299, 128
      %s311 = sadd.s32 %s309, %s310
      %s312 = smul.addr %s311, 4
      %s313 = scalar_lea.vmem %s2, %s312
      %p314 = pneg %p138
      %p315 = pneg %p135
      %p316 = pneg %p170
      %p317 = pneg %p167
      %s318 = smul.u32 32, %s24
      %p319 = scmp.lt.s32.totalorder %s21, 1
      %s320 = scalar_select %p319, %s21, 1
      %p321 = scmp.lt.s32.totalorder %s22, 1
      %s322 = scalar_select %p321, %s22, 1
      %p323 = scmp.lt.s32.totalorder %s23, 1
      %s324 = scalar_select %p323, %s23, 1
      %p325 = scmp.lt.s32.totalorder %s318, 31
      %s326 = scalar_select %p325, %s318, 31
      %s327 = smul.addr %s324, 32
      %s328 = sadd.s32 %s326, %s327
      %s329 = smul.addr %s322, 64
      %s330 = sadd.s32 %s328, %s329
      %s331 = smul.addr %s320, 128
      %s332 = sadd.s32 %s330, %s331
      %s333 = smul.addr %s332, 4
      %s334 = scalar_lea.vmem %s3, %s333
      %s335 = smul.u32 32, %s24
      %p336 = scmp.lt.s32.totalorder %s21, 1
      %s337 = scalar_select %p336, %s21, 1
      %p338 = scmp.lt.s32.totalorder %s22, 1
      %s339 = scalar_select %p338, %s22, 1
      %p340 = scmp.lt.s32.totalorder %s23, 1
      %s341 = scalar_select %p340, %s23, 1
      %p342 = scmp.lt.s32.totalorder %s335, 31
      %s343 = scalar_select %p342, %s335, 31
      %s344 = smul.addr %s341, 32
      %s345 = sadd.s32 %s343, %s344
      %s346 = smul.addr %s339, 64
      %s347 = sadd.s32 %s345, %s346
      %s348 = smul.addr %s337, 128
      %s349 = sadd.s32 %s347, %s348
      %s350 = smul.addr %s349, 4
      %s351 = scalar_lea.vmem %s0, %s350
      %s352 = smul.u32 32, %s24
      %s353 = smul.u32 32, %s25
      %p354 = scmp.lt.s32.totalorder %s21, 1
      %s355 = scalar_select %p354, %s21, 1
      %p356 = scmp.lt.s32.totalorder %s22, 1
      %s357 = scalar_select %p356, %s22, 1
      %p358 = scmp.lt.s32.totalorder %s23, 1
      %s359 = scalar_select %p358, %s23, 1
      %p360 = scmp.lt.s32.totalorder %s353, 31
      %s361 = scalar_select %p360, %s353, 31
      %s362 = smul.addr %s359, 32
      %s363 = sadd.s32 %s361, %s362
      %s364 = smul.addr %s357, 64
      %s365 = sadd.s32 %s363, %s364
      %s366 = smul.addr %s355, 128
      %s367 = sadd.s32 %s365, %s366
      %s368 = smul.addr %s367, 4
      %s369 = scalar_lea.vmem %s1, %s368
      %s370 = smul.u32 32, %s25
      %s371 = smul.u32 32, %s25
      %p372 = scmp.lt.s32.totalorder %s21, 1
      %s373 = scalar_select %p372, %s21, 1
      %p374 = scmp.lt.s32.totalorder %s22, 1
      %s375 = scalar_select %p374, %s22, 1
      %p376 = scmp.lt.s32.totalorder %s23, 1
      %s377 = scalar_select %p376, %s23, 1
      %p378 = scmp.lt.s32.totalorder %s371, 31
      %s379 = scalar_select %p378, %s371, 31
      %s380 = smul.addr %s377, 32
      %s381 = sadd.s32 %s379, %s380
      %s382 = smul.addr %s375, 64
      %s383 = sadd.s32 %s381, %s382
      %s384 = smul.addr %s373, 128
      %s385 = sadd.s32 %s383, %s384
      %s386 = smul.addr %s385, 4
      %s387 = scalar_lea.vmem %s2, %s386
      %s388 = smul.u32 32, %s25
      %s389 = smul.u32 32, %s24
      %p390 = scmp.lt.s32.totalorder %s21, 1
      %s391 = scalar_select %p390, %s21, 1
      %p392 = scmp.lt.s32.totalorder %s22, 1
      %s393 = scalar_select %p392, %s22, 1
      %p394 = scmp.lt.s32.totalorder %s23, 1
      %s395 = scalar_select %p394, %s23, 1
      %p396 = scmp.lt.s32.totalorder %s389, 31
      %s397 = scalar_select %p396, %s389, 31
      %s398 = smul.addr %s395, 32
      %s399 = sadd.s32 %s397, %s398
      %s400 = smul.addr %s393, 64
      %s401 = sadd.s32 %s399, %s400
      %s402 = smul.addr %s391, 128
      %s403 = sadd.s32 %s401, %s402
      %s404 = smul.addr %s403, 4
      %s405 = scalar_lea.vmem %s3, %s404
      %s406 = smul.u32 32, %s24
      %p408 = scmp.eq.s32.totalorder %s25, 0
      // Predicated region
      $region33: #{_lambda_.1} parent=31 // pred_check
        %p409 = pneg %p408
      $region34: #{_lambda_.1} parent=31 // pred_check_branch
        %411 = sbr.rel (%p409) target = $region36
      $region35: #{_lambda_.1} parent=31 // pred_region
        %vm412 = vcmask 7168
        %413 = vst.msk [vmem:[#allocation2] sm:$0xff] %vm412, -inf
        %414 = vst.msk [vmem:[#allocation2 + $0x8] sm:$0xff] %vm412, -inf
        %415 = vst.msk [vmem:[#allocation2 + $0x10] sm:$0xff] %vm412, -inf
        %416 = vst.msk [vmem:[#allocation2 + $0x18] sm:$0xff] %vm412, -inf
        %417 = vst.msk [vmem:[#allocation2 + $0x20] sm:$0xff] %vm412, -inf
        %418 = vst.msk [vmem:[#allocation2 + $0x28] sm:$0xff] %vm412, -inf
        %419 = vst.msk [vmem:[#allocation2 + $0x30] sm:$0xff] %vm412, -inf
        %420 = vst.msk [vmem:[#allocation2 + $0x38] sm:$0xff] %vm412, -inf
        %421 = vst.msk [vmem:[#allocation2 + $0x40] sm:$0xff] %vm412, -inf
        %422 = vst.msk [vmem:[#allocation2 + $0x48] sm:$0xff] %vm412, -inf
        %423 = vst.msk [vmem:[#allocation2 + $0x50] sm:$0xff] %vm412, -inf
        %424 = vst.msk [vmem:[#allocation2 + $0x58] sm:$0xff] %vm412, -inf
        %425 = vst.msk [vmem:[#allocation2 + $0x60] sm:$0xff] %vm412, -inf
        %426 = vst.msk [vmem:[#allocation2 + $0x68] sm:$0xff] %vm412, -inf
        %427 = vst.msk [vmem:[#allocation2 + $0x70] sm:$0xff] %vm412, -inf
        %428 = vst.msk [vmem:[#allocation2 + $0x78] sm:$0xff] %vm412, -inf
        %429 = vst.msk [vmem:[#allocation2 + $0x80] sm:$0xff] %vm412, -inf
        %430 = vst.msk [vmem:[#allocation2 + $0x88] sm:$0xff] %vm412, -inf
        %431 = vst.msk [vmem:[#allocation2 + $0x90] sm:$0xff] %vm412, -inf
        %432 = vst.msk [vmem:[#allocation2 + $0x98] sm:$0xff] %vm412, -inf
        %433 = vst.msk [vmem:[#allocation2 + $0xa0] sm:$0xff] %vm412, -inf
        %434 = vst.msk [vmem:[#allocation2 + $0xa8] sm:$0xff] %vm412, -inf
        %435 = vst.msk [vmem:[#allocation2 + $0xb0] sm:$0xff] %vm412, -inf
        %436 = vst.msk [vmem:[#allocation2 + $0xb8] sm:$0xff] %vm412, -inf
        %437 = vst.msk [vmem:[#allocation2 + $0xc0] sm:$0xff] %vm412, -inf
        %438 = vst.msk [vmem:[#allocation2 + $0xc8] sm:$0xff] %vm412, -inf
        %439 = vst.msk [vmem:[#allocation2 + $0xd0] sm:$0xff] %vm412, -inf
        %440 = vst.msk [vmem:[#allocation2 + $0xd8] sm:$0xff] %vm412, -inf
        %441 = vst.msk [vmem:[#allocation2 + $0xe0] sm:$0xff] %vm412, -inf
        %442 = vst.msk [vmem:[#allocation2 + $0xe8] sm:$0xff] %vm412, -inf
        %443 = vst.msk [vmem:[#allocation2 + $0xf0] sm:$0xff] %vm412, -inf
        %444 = vst.msk [vmem:[#allocation2 + $0xf8] sm:$0xff] %vm412, -inf
        %445 = vst.msk [vmem:[#allocation3] sm:$0xff] %vm412, 0.0
        %446 = vst.msk [vmem:[#allocation3 + $0x8] sm:$0xff] %vm412, 0.0
        %447 = vst.msk [vmem:[#allocation3 + $0x10] sm:$0xff] %vm412, 0.0
        %448 = vst.msk [vmem:[#allocation3 + $0x18] sm:$0xff] %vm412, 0.0
        %449 = vst.msk [vmem:[#allocation3 + $0x20] sm:$0xff] %vm412, 0.0
        %450 = vst.msk [vmem:[#allocation3 + $0x28] sm:$0xff] %vm412, 0.0
        %451 = vst.msk [vmem:[#allocation3 + $0x30] sm:$0xff] %vm412, 0.0
        %452 = vst.msk [vmem:[#allocation3 + $0x38] sm:$0xff] %vm412, 0.0
        %453 = vst.msk [vmem:[#allocation3 + $0x40] sm:$0xff] %vm412, 0.0
        %454 = vst.msk [vmem:[#allocation3 + $0x48] sm:$0xff] %vm412, 0.0
        %455 = vst.msk [vmem:[#allocation3 + $0x50] sm:$0xff] %vm412, 0.0
        %456 = vst.msk [vmem:[#allocation3 + $0x58] sm:$0xff] %vm412, 0.0
        %457 = vst.msk [vmem:[#allocation3 + $0x60] sm:$0xff] %vm412, 0.0
        %458 = vst.msk [vmem:[#allocation3 + $0x68] sm:$0xff] %vm412, 0.0
        %459 = vst.msk [vmem:[#allocation3 + $0x70] sm:$0xff] %vm412, 0.0
        %460 = vst.msk [vmem:[#allocation3 + $0x78] sm:$0xff] %vm412, 0.0
        %461 = vst.msk [vmem:[#allocation3 + $0x80] sm:$0xff] %vm412, 0.0
        %462 = vst.msk [vmem:[#allocation3 + $0x88] sm:$0xff] %vm412, 0.0
        %463 = vst.msk [vmem:[#allocation3 + $0x90] sm:$0xff] %vm412, 0.0
        %464 = vst.msk [vmem:[#allocation3 + $0x98] sm:$0xff] %vm412, 0.0
        %465 = vst.msk [vmem:[#allocation3 + $0xa0] sm:$0xff] %vm412, 0.0
        %466 = vst.msk [vmem:[#allocation3 + $0xa8] sm:$0xff] %vm412, 0.0
        %467 = vst.msk [vmem:[#allocation3 + $0xb0] sm:$0xff] %vm412, 0.0
        %468 = vst.msk [vmem:[#allocation3 + $0xb8] sm:$0xff] %vm412, 0.0
        %469 = vst.msk [vmem:[#allocation3 + $0xc0] sm:$0xff] %vm412, 0.0
        %470 = vst.msk [vmem:[#allocation3 + $0xc8] sm:$0xff] %vm412, 0.0
        %471 = vst.msk [vmem:[#allocation3 + $0xd0] sm:$0xff] %vm412, 0.0
        %472 = vst.msk [vmem:[#allocation3 + $0xd8] sm:$0xff] %vm412, 0.0
        %473 = vst.msk [vmem:[#allocation3 + $0xe0] sm:$0xff] %vm412, 0.0
        %474 = vst.msk [vmem:[#allocation3 + $0xe8] sm:$0xff] %vm412, 0.0
        %475 = vst.msk [vmem:[#allocation3 + $0xf0] sm:$0xff] %vm412, 0.0
        %476 = vst.msk [vmem:[#allocation3 + $0xf8] sm:$0xff] %vm412, 0.0
        %477 = vst [vmem:[#allocation4] sm:$0xff] 0.0
        %478 = vst [vmem:[#allocation4 + $0x8] sm:$0xff] 0.0
        %479 = vst [vmem:[#allocation4 + $0x10] sm:$0xff] 0.0
        %480 = vst [vmem:[#allocation4 + $0x18] sm:$0xff] 0.0
        %481 = vst [vmem:[#allocation4 + $0x20] sm:$0xff] 0.0
        %482 = vst [vmem:[#allocation4 + $0x28] sm:$0xff] 0.0
        %483 = vst [vmem:[#allocation4 + $0x30] sm:$0xff] 0.0
        %484 = vst [vmem:[#allocation4 + $0x38] sm:$0xff] 0.0
        %485 = vst [vmem:[#allocation4 + $0x40] sm:$0xff] 0.0
        %486 = vst [vmem:[#allocation4 + $0x48] sm:$0xff] 0.0
        %487 = vst [vmem:[#allocation4 + $0x50] sm:$0xff] 0.0
        %488 = vst [vmem:[#allocation4 + $0x58] sm:$0xff] 0.0
        %489 = vst [vmem:[#allocation4 + $0x60] sm:$0xff] 0.0
        %490 = vst [vmem:[#allocation4 + $0x68] sm:$0xff] 0.0
        %491 = vst [vmem:[#allocation4 + $0x70] sm:$0xff] 0.0
        %492 = vst [vmem:[#allocation4 + $0x78] sm:$0xff] 0.0
        %493 = vst [vmem:[#allocation4 + $0x80] sm:$0xff] 0.0
        %494 = vst [vmem:[#allocation4 + $0x88] sm:$0xff] 0.0
        %495 = vst [vmem:[#allocation4 + $0x90] sm:$0xff] 0.0
        %496 = vst [vmem:[#allocation4 + $0x98] sm:$0xff] 0.0
        %497 = vst [vmem:[#allocation4 + $0xa0] sm:$0xff] 0.0
        %498 = vst [vmem:[#allocation4 + $0xa8] sm:$0xff] 0.0
        %499 = vst [vmem:[#allocation4 + $0xb0] sm:$0xff] 0.0
        %500 = vst [vmem:[#allocation4 + $0xb8] sm:$0xff] 0.0
        %501 = vst [vmem:[#allocation4 + $0xc0] sm:$0xff] 0.0
        %502 = vst [vmem:[#allocation4 + $0xc8] sm:$0xff] 0.0
        %503 = vst [vmem:[#allocation4 + $0xd0] sm:$0xff] 0.0
        %504 = vst [vmem:[#allocation4 + $0xd8] sm:$0xff] 0.0
        %505 = vst [vmem:[#allocation4 + $0xe0] sm:$0xff] 0.0
        %506 = vst [vmem:[#allocation4 + $0xe8] sm:$0xff] 0.0
        %507 = vst [vmem:[#allocation4 + $0xf0] sm:$0xff] 0.0
        %508 = vst [vmem:[#allocation4 + $0xf8] sm:$0xff] 0.0
      $region36: #{_lambda_.1} parent=31 // pred_fallthru
        _
      %v509 = vld [vmem:[%s351] sm:$0xf]
      %v510 = vld [vmem:[%s351 + $0x4] sm:$0xf]
      %v511 = vld [vmem:[%s351 + $0x8] sm:$0xf]
      %v512 = vld [vmem:[%s351 + $0xc] sm:$0xf]
      %v513 = vld [vmem:[%s351 + $0x10] sm:$0xf]
      %v514 = vld [vmem:[%s351 + $0x14] sm:$0xf]
      %v515 = vld [vmem:[%s351 + $0x18] sm:$0xf]
      %v516 = vld [vmem:[%s351 + $0x1c] sm:$0xf]
      %v517 = vld [vmem:[%s351 + $0x20] sm:$0xf]
      %v518 = vld [vmem:[%s351 + $0x24] sm:$0xf]
      %v519 = vld [vmem:[%s351 + $0x28] sm:$0xf]
      %v520 = vld [vmem:[%s351 + $0x2c] sm:$0xf]
      %v521 = vld [vmem:[%s351 + $0x30] sm:$0xf]
      %v522 = vld [vmem:[%s351 + $0x34] sm:$0xf]
      %v523 = vld [vmem:[%s351 + $0x38] sm:$0xf]
      %v524 = vld [vmem:[%s351 + $0x3c] sm:$0xf]
      %v525 = vld [vmem:[%s351 + $0x40] sm:$0xf]
      %v526 = vld [vmem:[%s351 + $0x44] sm:$0xf]
      %v527 = vld [vmem:[%s351 + $0x48] sm:$0xf]
      %v528 = vld [vmem:[%s351 + $0x4c] sm:$0xf]
      %v529 = vld [vmem:[%s351 + $0x50] sm:$0xf]
      %v530 = vld [vmem:[%s351 + $0x54] sm:$0xf]
      %v531 = vld [vmem:[%s351 + $0x58] sm:$0xf]
      %v532 = vld [vmem:[%s351 + $0x5c] sm:$0xf]
      %v533 = vld [vmem:[%s351 + $0x60] sm:$0xf]
      %v534 = vld [vmem:[%s351 + $0x64] sm:$0xf]
      %v535 = vld [vmem:[%s351 + $0x68] sm:$0xf]
      %v536 = vld [vmem:[%s351 + $0x6c] sm:$0xf]
      %v537 = vld [vmem:[%s351 + $0x70] sm:$0xf]
      %v538 = vld [vmem:[%s351 + $0x74] sm:$0xf]
      %v539 = vld [vmem:[%s351 + $0x78] sm:$0xf]
      %v540 = vld [vmem:[%s351 + $0x7c] sm:$0xf]
      %v541 = vld [vmem:[%s369] sm:$0xf]
      %v542 = vld [vmem:[%s369 + $0x4] sm:$0xf]
      %v543 = vld [vmem:[%s369 + $0x8] sm:$0xf]
      %v544 = vld [vmem:[%s369 + $0xc] sm:$0xf]
      %v545 = vld [vmem:[%s369 + $0x10] sm:$0xf]
      %v546 = vld [vmem:[%s369 + $0x14] sm:$0xf]
      %v547 = vld [vmem:[%s369 + $0x18] sm:$0xf]
      %v548 = vld [vmem:[%s369 + $0x1c] sm:$0xf]
      %v549 = vld [vmem:[%s369 + $0x20] sm:$0xf]
      %v550 = vld [vmem:[%s369 + $0x24] sm:$0xf]
      %v551 = vld [vmem:[%s369 + $0x28] sm:$0xf]
      %v552 = vld [vmem:[%s369 + $0x2c] sm:$0xf]
      %v553 = vld [vmem:[%s369 + $0x30] sm:$0xf]
      %v554 = vld [vmem:[%s369 + $0x34] sm:$0xf]
      %v555 = vld [vmem:[%s369 + $0x38] sm:$0xf]
      %v556 = vld [vmem:[%s369 + $0x3c] sm:$0xf]
      %v557 = vld [vmem:[%s369 + $0x40] sm:$0xf]
      %v558 = vld [vmem:[%s369 + $0x44] sm:$0xf]
      %v559 = vld [vmem:[%s369 + $0x48] sm:$0xf]
      %v560 = vld [vmem:[%s369 + $0x4c] sm:$0xf]
      %v561 = vld [vmem:[%s369 + $0x50] sm:$0xf]
      %v562 = vld [vmem:[%s369 + $0x54] sm:$0xf]
      %v563 = vld [vmem:[%s369 + $0x58] sm:$0xf]
      %v564 = vld [vmem:[%s369 + $0x5c] sm:$0xf]
      %v565 = vld [vmem:[%s369 + $0x60] sm:$0xf]
      %v566 = vld [vmem:[%s369 + $0x64] sm:$0xf]
      %v567 = vld [vmem:[%s369 + $0x68] sm:$0xf]
      %v568 = vld [vmem:[%s369 + $0x6c] sm:$0xf]
      %v569 = vld [vmem:[%s369 + $0x70] sm:$0xf]
      %v570 = vld [vmem:[%s369 + $0x74] sm:$0xf]
      %v571 = vld [vmem:[%s369 + $0x78] sm:$0xf]
      %v572 = vld [vmem:[%s369 + $0x7c] sm:$0xf]
      %v573 = vld [vmem:[%s387] sm:$0xf]
      %v574 = vld [vmem:[%s387 + $0x4] sm:$0xf]
      %v575 = vld [vmem:[%s387 + $0x8] sm:$0xf]
      %v576 = vld [vmem:[%s387 + $0xc] sm:$0xf]
      %v577 = vld [vmem:[%s387 + $0x10] sm:$0xf]
      %v578 = vld [vmem:[%s387 + $0x14] sm:$0xf]
      %v579 = vld [vmem:[%s387 + $0x18] sm:$0xf]
      %v580 = vld [vmem:[%s387 + $0x1c] sm:$0xf]
      %v581 = vld [vmem:[%s387 + $0x20] sm:$0xf]
      %v582 = vld [vmem:[%s387 + $0x24] sm:$0xf]
      %v583 = vld [vmem:[%s387 + $0x28] sm:$0xf]
      %v584 = vld [vmem:[%s387 + $0x2c] sm:$0xf]
      %v585 = vld [vmem:[%s387 + $0x30] sm:$0xf]
      %v586 = vld [vmem:[%s387 + $0x34] sm:$0xf]
      %v587 = vld [vmem:[%s387 + $0x38] sm:$0xf]
      %v588 = vld [vmem:[%s387 + $0x3c] sm:$0xf]
      %v589 = vld [vmem:[%s387 + $0x40] sm:$0xf]
      %v590 = vld [vmem:[%s387 + $0x44] sm:$0xf]
      %v591 = vld [vmem:[%s387 + $0x48] sm:$0xf]
      %v592 = vld [vmem:[%s387 + $0x4c] sm:$0xf]
      %v593 = vld [vmem:[%s387 + $0x50] sm:$0xf]
      %v594 = vld [vmem:[%s387 + $0x54] sm:$0xf]
      %v595 = vld [vmem:[%s387 + $0x58] sm:$0xf]
      %v596 = vld [vmem:[%s387 + $0x5c] sm:$0xf]
      %v597 = vld [vmem:[%s387 + $0x60] sm:$0xf]
      %v598 = vld [vmem:[%s387 + $0x64] sm:$0xf]
      %v599 = vld [vmem:[%s387 + $0x68] sm:$0xf]
      %v600 = vld [vmem:[%s387 + $0x6c] sm:$0xf]
      %v601 = vld [vmem:[%s387 + $0x70] sm:$0xf]
      %v602 = vld [vmem:[%s387 + $0x74] sm:$0xf]
      %v603 = vld [vmem:[%s387 + $0x78] sm:$0xf]
      %v604 = vld [vmem:[%s387 + $0x7c] sm:$0xf]
      %v637 = vunpack.c.l.b16 %v509
      %v638 = vunpack.c.l.b16 %v510
      %v639 = vunpack.c.l.b16 %v511
      %v640 = vunpack.c.l.b16 %v512
      %v641 = vunpack.c.l.b16 %v513
      %v642 = vunpack.c.l.b16 %v514
      %v643 = vunpack.c.l.b16 %v515
      %v644 = vunpack.c.l.b16 %v516
      %v645 = vunpack.c.l.b16 %v517
      %v646 = vunpack.c.l.b16 %v518
      %v647 = vunpack.c.l.b16 %v519
      %v648 = vunpack.c.l.b16 %v520
      %v649 = vunpack.c.l.b16 %v521
      %v650 = vunpack.c.l.b16 %v522
      %v651 = vunpack.c.l.b16 %v523
      %v652 = vunpack.c.l.b16 %v524
      %v653 = vunpack.c.l.b16 %v525
      %v654 = vunpack.c.l.b16 %v526
      %v655 = vunpack.c.l.b16 %v527
      %v656 = vunpack.c.l.b16 %v528
      %v657 = vunpack.c.l.b16 %v529
      %v658 = vunpack.c.l.b16 %v530
      %v659 = vunpack.c.l.b16 %v531
      %v660 = vunpack.c.l.b16 %v532
      %v661 = vunpack.c.l.b16 %v533
      %v662 = vunpack.c.l.b16 %v534
      %v663 = vunpack.c.l.b16 %v535
      %v664 = vunpack.c.l.b16 %v536
      %v665 = vunpack.c.l.b16 %v537
      %v666 = vunpack.c.l.b16 %v538
      %v667 = vunpack.c.l.b16 %v539
      %v668 = vunpack.c.l.b16 %v540
      %v669 = vpack.c.b16 %v638, %v637
      %v670 = vpack.c.b16 %v640, %v639
      %v671 = vpack.c.b16 %v642, %v641
      %v672 = vpack.c.b16 %v644, %v643
      %v673 = vpack.c.b16 %v646, %v645
      %v674 = vpack.c.b16 %v648, %v647
      %v675 = vpack.c.b16 %v650, %v649
      %v676 = vpack.c.b16 %v652, %v651
      %v677 = vpack.c.b16 %v654, %v653
      %v678 = vpack.c.b16 %v656, %v655
      %v679 = vpack.c.b16 %v658, %v657
      %v680 = vpack.c.b16 %v660, %v659
      %v681 = vpack.c.b16 %v662, %v661
      %v682 = vpack.c.b16 %v664, %v663
      %v683 = vpack.c.b16 %v666, %v665
      %v684 = vpack.c.b16 %v668, %v667
      %v733 = vunpack.c.l.b16 %v541
      %v734 = vunpack.c.l.b16 %v542
      %v735 = vunpack.c.l.b16 %v543
      %v736 = vunpack.c.l.b16 %v544
      %v737 = vunpack.c.l.b16 %v545
      %v738 = vunpack.c.l.b16 %v546
      %v739 = vunpack.c.l.b16 %v547
      %v740 = vunpack.c.l.b16 %v548
      %v741 = vunpack.c.l.b16 %v549
      %v742 = vunpack.c.l.b16 %v550
      %v743 = vunpack.c.l.b16 %v551
      %v744 = vunpack.c.l.b16 %v552
      %v745 = vunpack.c.l.b16 %v553
      %v746 = vunpack.c.l.b16 %v554
      %v747 = vunpack.c.l.b16 %v555
      %v748 = vunpack.c.l.b16 %v556
      %v749 = vunpack.c.l.b16 %v557
      %v750 = vunpack.c.l.b16 %v558
      %v751 = vunpack.c.l.b16 %v559
      %v752 = vunpack.c.l.b16 %v560
      %v753 = vunpack.c.l.b16 %v561
      %v754 = vunpack.c.l.b16 %v562
      %v755 = vunpack.c.l.b16 %v563
      %v756 = vunpack.c.l.b16 %v564
      %v757 = vunpack.c.l.b16 %v565
      %v758 = vunpack.c.l.b16 %v566
      %v759 = vunpack.c.l.b16 %v567
      %v760 = vunpack.c.l.b16 %v568
      %v761 = vunpack.c.l.b16 %v569
      %v762 = vunpack.c.l.b16 %v570
      %v763 = vunpack.c.l.b16 %v571
      %v764 = vunpack.c.l.b16 %v572
      %v765 = vpack.c.b16 %v734, %v733
      %v766 = vpack.c.b16 %v736, %v735
      %v767 = vpack.c.b16 %v738, %v737
      %v768 = vpack.c.b16 %v740, %v739
      %v769 = vpack.c.b16 %v742, %v741
      %v770 = vpack.c.b16 %v744, %v743
      %v771 = vpack.c.b16 %v746, %v745
      %v772 = vpack.c.b16 %v748, %v747
      %v773 = vpack.c.b16 %v750, %v749
      %v774 = vpack.c.b16 %v752, %v751
      %v775 = vpack.c.b16 %v754, %v753
      %v776 = vpack.c.b16 %v756, %v755
      %v777 = vpack.c.b16 %v758, %v757
      %v778 = vpack.c.b16 %v760, %v759
      %v779 = vpack.c.b16 %v762, %v761
      %v780 = vpack.c.b16 %v764, %v763
      %797 = vmatprep.subr.bf16.mxu0 0
      %798 = vmatpush1.bf16.xpose.msra.mxu0 %v765
      %799 = vmatprep.subr.bf16.mxu0 0
      %800 = vmatpush1.bf16.xpose.msra.mxu0 %v766
      %801 = vmatprep.subr.bf16.mxu0 0
      %802 = vmatpush1.bf16.xpose.msra.mxu0 %v767
      %803 = vmatprep.subr.bf16.mxu0 0
      %804 = vmatpush1.bf16.xpose.msra.mxu0 %v768
      %805 = vmatprep.subr.bf16.mxu0 0
      %806 = vmatpush1.bf16.xpose.msra.mxu0 %v769
      %807 = vmatprep.subr.bf16.mxu0 0
      %808 = vmatpush1.bf16.xpose.msra.mxu0 %v770
      %809 = vmatprep.subr.bf16.mxu0 0
      %810 = vmatpush1.bf16.xpose.msra.mxu0 %v771
      %811 = vmatprep.subr.bf16.mxu0 0
      %812 = vmatpush1.bf16.xpose.msra.mxu0 %v772
      %813 = vmatprep.subr.bf16.mxu0 0
      %814 = vmatpush1.bf16.xpose.msra.mxu0 %v773
      %815 = vmatprep.subr.bf16.mxu0 0
      %816 = vmatpush1.bf16.xpose.msra.mxu0 %v774
      %817 = vmatprep.subr.bf16.mxu0 0
      %818 = vmatpush1.bf16.xpose.msra.mxu0 %v775
      %819 = vmatprep.subr.bf16.mxu0 0
      %820 = vmatpush1.bf16.xpose.msra.mxu0 %v776
      %821 = vmatprep.subr.bf16.mxu0 0
      %822 = vmatpush1.bf16.xpose.msra.mxu0 %v777
      %823 = vmatprep.subr.bf16.mxu0 0
      %824 = vmatpush1.bf16.xpose.msra.mxu0 %v778
      %825 = vmatprep.subr.bf16.mxu0 0
      %826 = vmatpush1.bf16.xpose.msra.mxu0 %v779
      %827 = vmatprep.subr.bf16.mxu0 0
      %828 = vmatpush1.bf16.xpose.msra.mxu0 %v780
      %829 = vmatprep.mubr.bf16.mxu0 0
      %830 = vmatmul.mubr.bf16.gmra.mrb[0].mxu0 %v669
      %v831 = vpop.f32.mrb[0].mxu0
      %v832 = vadd.f32 0.0, %v831
      %v833 = vpop.f32.mrb[0].mxu0
      %v834 = vadd.f32 0.0, %v833
      %v835 = vpop.f32.mrb[0].mxu0
      %v836 = vadd.f32 0.0, %v835
      %v837 = vpop.f32.mrb[0].mxu0
      %v838 = vadd.f32 0.0, %v837
      %839 = vmatprep.mubr.bf16.mxu0 0
      %840 = vmatmul.mubr.bf16.gmra.mrb[0].mxu0 %v670
      %v841 = vpop.f32.mrb[0].mxu0
      %v842 = vadd.f32 0.0, %v841
      %v843 = vpop.f32.mrb[0].mxu0
      %v844 = vadd.f32 0.0, %v843
      %v845 = vpop.f32.mrb[0].mxu0
      %v846 = vadd.f32 0.0, %v845
      %v847 = vpop.f32.mrb[0].mxu0
      %v848 = vadd.f32 0.0, %v847
      %849 = vmatprep.mubr.bf16.mxu0 0
      %850 = vmatmul.mubr.bf16.gmra.mrb[0].mxu0 %v671
      %v851 = vpop.f32.mrb[0].mxu0
      %v852 = vadd.f32 0.0, %v851
      %v853 = vpop.f32.mrb[0].mxu0
      %v854 = vadd.f32 0.0, %v853
      %v855 = vpop.f32.mrb[0].mxu0
      %v856 = vadd.f32 0.0, %v855
      %v857 = vpop.f32.mrb[0].mxu0
      %v858 = vadd.f32 0.0, %v857
      %859 = vmatprep.mubr.bf16.mxu0 0
      %860 = vmatmul.mubr.bf16.gmra.mrb[0].mxu0 %v672
      %v861 = vpop.f32.mrb[0].mxu0
      %v862 = vadd.f32 0.0, %v861
      %v863 = vpop.f32.mrb[0].mxu0
      %v864 = vadd.f32 0.0, %v863
      %v865 = vpop.f32.mrb[0].mxu0
      %v866 = vadd.f32 0.0, %v865
      %v867 = vpop.f32.mrb[0].mxu0
      %v868 = vadd.f32 0.0, %v867
      %869 = vmatprep.mubr.bf16.mxu0 0
      %870 = vmatmul.mubr.bf16.gmra.mrb[0].mxu0 %v673
      %v871 = vpop.f32.mrb[0].mxu0
      %v872 = vadd.f32 0.0, %v871
      %v873 = vpop.f32.mrb[0].mxu0
      %v874 = vadd.f32 0.0, %v873
      %v875 = vpop.f32.mrb[0].mxu0
      %v876 = vadd.f32 0.0, %v875
      %v877 = vpop.f32.mrb[0].mxu0
      %v878 = vadd.f32 0.0, %v877
      %879 = vmatprep.mubr.bf16.mxu0 0
      %880 = vmatmul.mubr.bf16.gmra.mrb[0].mxu0 %v674
      %v881 = vpop.f32.mrb[0].mxu0
      %v882 = vadd.f32 0.0, %v881
      %v883 = vpop.f32.mrb[0].mxu0
      %v884 = vadd.f32 0.0, %v883
      %v885 = vpop.f32.mrb[0].mxu0
      %v886 = vadd.f32 0.0, %v885
      %v887 = vpop.f32.mrb[0].mxu0
      %v888 = vadd.f32 0.0, %v887
      %889 = vmatprep.mubr.bf16.mxu0 0
      %890 = vmatmul.mubr.bf16.gmra.mrb[0].mxu0 %v675
      %v891 = vpop.f32.mrb[0].mxu0
      %v892 = vadd.f32 0.0, %v891
      %v893 = vpop.f32.mrb[0].mxu0
      %v894 = vadd.f32 0.0, %v893
      %v895 = vpop.f32.mrb[0].mxu0
      %v896 = vadd.f32 0.0, %v895
      %v897 = vpop.f32.mrb[0].mxu0
      %v898 = vadd.f32 0.0, %v897
      %899 = vmatprep.mubr.bf16.mxu0 0
      %900 = vmatmul.mubr.bf16.gmra.mrb[0].mxu0 %v676
      %v901 = vpop.f32.mrb[0].mxu0
      %v902 = vadd.f32 0.0, %v901
      %v903 = vpop.f32.mrb[0].mxu0
      %v904 = vadd.f32 0.0, %v903
      %v905 = vpop.f32.mrb[0].mxu0
      %v906 = vadd.f32 0.0, %v905
      %v907 = vpop.f32.mrb[0].mxu0
      %v908 = vadd.f32 0.0, %v907
      %909 = vmatprep.mubr.bf16.mxu0 0
      %910 = vmatmul.mubr.bf16.gmra.mrb[0].mxu0 %v677
      %v911 = vpop.f32.mrb[0].mxu0
      %v912 = vadd.f32 0.0, %v911
      %v913 = vpop.f32.mrb[0].mxu0
      %v914 = vadd.f32 0.0, %v913
      %v915 = vpop.f32.mrb[0].mxu0
      %v916 = vadd.f32 0.0, %v915
      %v917 = vpop.f32.mrb[0].mxu0
      %v918 = vadd.f32 0.0, %v917
      %919 = vmatprep.mubr.bf16.mxu0 0
      %920 = vmatmul.mubr.bf16.gmra.mrb[0].mxu0 %v678
      %v921 = vpop.f32.mrb[0].mxu0
      %v922 = vadd.f32 0.0, %v921
      %v923 = vpop.f32.mrb[0].mxu0
      %v924 = vadd.f32 0.0, %v923
      %v925 = vpop.f32.mrb[0].mxu0
      %v926 = vadd.f32 0.0, %v925
      %v927 = vpop.f32.mrb[0].mxu0
      %v928 = vadd.f32 0.0, %v927
      %929 = vmatprep.mubr.bf16.mxu0 0
      %930 = vmatmul.mubr.bf16.gmra.mrb[0].mxu0 %v679
      %v931 = vpop.f32.mrb[0].mxu0
      %v932 = vadd.f32 0.0, %v931
      %v933 = vpop.f32.mrb[0].mxu0
      %v934 = vadd.f32 0.0, %v933
      %v935 = vpop.f32.mrb[0].mxu0
      %v936 = vadd.f32 0.0, %v935
      %v937 = vpop.f32.mrb[0].mxu0
      %v938 = vadd.f32 0.0, %v937
      %939 = vmatprep.mubr.bf16.mxu0 0
      %940 = vmatmul.mubr.bf16.gmra.mrb[0].mxu0 %v680
      %v941 = vpop.f32.mrb[0].mxu0
      %v942 = vadd.f32 0.0, %v941
      %v943 = vpop.f32.mrb[0].mxu0
      %v944 = vadd.f32 0.0, %v943
      %v945 = vpop.f32.mrb[0].mxu0
      %v946 = vadd.f32 0.0, %v945
      %v947 = vpop.f32.mrb[0].mxu0
      %v948 = vadd.f32 0.0, %v947
      %949 = vmatprep.mubr.bf16.mxu0 0
      %950 = vmatmul.mubr.bf16.gmra.mrb[0].mxu0 %v681
      %v951 = vpop.f32.mrb[0].mxu0
      %v952 = vadd.f32 0.0, %v951
      %v953 = vpop.f32.mrb[0].mxu0
      %v954 = vadd.f32 0.0, %v953
      %v955 = vpop.f32.mrb[0].mxu0
      %v956 = vadd.f32 0.0, %v955
      %v957 = vpop.f32.mrb[0].mxu0
      %v958 = vadd.f32 0.0, %v957
      %959 = vmatprep.mubr.bf16.mxu0 0
      %960 = vmatmul.mubr.bf16.gmra.mrb[0].mxu0 %v682
      %v961 = vpop.f32.mrb[0].mxu0
      %v962 = vadd.f32 0.0, %v961
      %v963 = vpop.f32.mrb[0].mxu0
      %v964 = vadd.f32 0.0, %v963
      %v965 = vpop.f32.mrb[0].mxu0
      %v966 = vadd.f32 0.0, %v965
      %v967 = vpop.f32.mrb[0].mxu0
      %v968 = vadd.f32 0.0, %v967
      %969 = vmatprep.mubr.bf16.mxu0 0
      %970 = vmatmul.mubr.bf16.gmra.mrb[0].mxu0 %v683
      %v971 = vpop.f32.mrb[0].mxu0
      %v972 = vadd.f32 0.0, %v971
      %v973 = vpop.f32.mrb[0].mxu0
      %v974 = vadd.f32 0.0, %v973
      %v975 = vpop.f32.mrb[0].mxu0
      %v976 = vadd.f32 0.0, %v975
      %v977 = vpop.f32.mrb[0].mxu0
      %v978 = vadd.f32 0.0, %v977
      %979 = vmatprep.mubr.bf16.mxu0 0
      %980 = vmatmul.mubr.bf16.gmra.mrb[0].mxu0 %v684
      %v981 = vpop.f32.mrb[0].mxu0
      %v982 = vadd.f32 0.0, %v981
      %v983 = vpop.f32.mrb[0].mxu0
      %v984 = vadd.f32 0.0, %v983
      %v985 = vpop.f32.mrb[0].mxu0
      %v986 = vadd.f32 0.0, %v985
      %v987 = vpop.f32.mrb[0].mxu0
      %v988 = vadd.f32 0.0, %v987
      %989 = vdwg.mxu0
      %v990 = vld [vmem:[#allocation2] sm:$0xff]
      %v991 = vld [vmem:[#allocation2 + $0x8] sm:$0xff]
      %v992 = vld [vmem:[#allocation2 + $0x10] sm:$0xff]
      %v993 = vld [vmem:[#allocation2 + $0x18] sm:$0xff]
      %v994 = vld [vmem:[#allocation2 + $0x20] sm:$0xff]
      %v995 = vld [vmem:[#allocation2 + $0x28] sm:$0xff]
      %v996 = vld [vmem:[#allocation2 + $0x30] sm:$0xff]
      %v997 = vld [vmem:[#allocation2 + $0x38] sm:$0xff]
      %v998 = vld [vmem:[#allocation2 + $0x40] sm:$0xff]
      %v999 = vld [vmem:[#allocation2 + $0x48] sm:$0xff]
      %v1000 = vld [vmem:[#allocation2 + $0x50] sm:$0xff]
      %v1001 = vld [vmem:[#allocation2 + $0x58] sm:$0xff]
      %v1002 = vld [vmem:[#allocation2 + $0x60] sm:$0xff]
      %v1003 = vld [vmem:[#allocation2 + $0x68] sm:$0xff]
      %v1004 = vld [vmem:[#allocation2 + $0x70] sm:$0xff]
      %v1005 = vld [vmem:[#allocation2 + $0x78] sm:$0xff]
      %v1006 = vld [vmem:[#allocation2 + $0x80] sm:$0xff]
      %v1007 = vld [vmem:[#allocation2 + $0x88] sm:$0xff]
      %v1008 = vld [vmem:[#allocation2 + $0x90] sm:$0xff]
      %v1009 = vld [vmem:[#allocation2 + $0x98] sm:$0xff]
      %v1010 = vld [vmem:[#allocation2 + $0xa0] sm:$0xff]
      %v1011 = vld [vmem:[#allocation2 + $0xa8] sm:$0xff]
      %v1012 = vld [vmem:[#allocation2 + $0xb0] sm:$0xff]
      %v1013 = vld [vmem:[#allocation2 + $0xb8] sm:$0xff]
      %v1014 = vld [vmem:[#allocation2 + $0xc0] sm:$0xff]
      %v1015 = vld [vmem:[#allocation2 + $0xc8] sm:$0xff]
      %v1016 = vld [vmem:[#allocation2 + $0xd0] sm:$0xff]
      %v1017 = vld [vmem:[#allocation2 + $0xd8] sm:$0xff]
      %v1018 = vld [vmem:[#allocation2 + $0xe0] sm:$0xff]
      %v1019 = vld [vmem:[#allocation2 + $0xe8] sm:$0xff]
      %v1020 = vld [vmem:[#allocation2 + $0xf0] sm:$0xff]
      %v1021 = vld [vmem:[#allocation2 + $0xf8] sm:$0xff]
      %v1022 = vmax.f32 %v832, %v834
      %1023 = vmax.xlane.f32.xlu0 %v1022
      %v1024 = vpop.xlane.xlu0 %1023
      %v1025 = vmax.f32 %v836, %v838
      %1026 = vmax.xlane.f32.xlu0 %v1025
      %v1027 = vpop.xlane.xlu0 %1026
      %v1028 = vmax.f32 %v842, %v844
      %1029 = vmax.xlane.f32.xlu0 %v1028
      %v1030 = vpop.xlane.xlu0 %1029
      %v1031 = vmax.f32 %v846, %v848
      %1032 = vmax.xlane.f32.xlu0 %v1031
      %v1033 = vpop.xlane.xlu0 %1032
      %v1034 = vmax.f32 %v852, %v854
      %1035 = vmax.xlane.f32.xlu0 %v1034
      %v1036 = vpop.xlane.xlu0 %1035
      %v1037 = vmax.f32 %v856, %v858
      %1038 = vmax.xlane.f32.xlu0 %v1037
      %v1039 = vpop.xlane.xlu0 %1038
      %v1040 = vmax.f32 %v862, %v864
      %1041 = vmax.xlane.f32.xlu0 %v1040
      %v1042 = vpop.xlane.xlu0 %1041
      %v1043 = vmax.f32 %v866, %v868
      %1044 = vmax.xlane.f32.xlu0 %v1043
      %v1045 = vpop.xlane.xlu0 %1044
      %v1046 = vmax.f32 %v872, %v874
      %1047 = vmax.xlane.f32.xlu0 %v1046
      %v1048 = vpop.xlane.xlu0 %1047
      %v1049 = vmax.f32 %v876, %v878
      %1050 = vmax.xlane.f32.xlu0 %v1049
      %v1051 = vpop.xlane.xlu0 %1050
      %v1052 = vmax.f32 %v882, %v884
      %1053 = vmax.xlane.f32.xlu0 %v1052
      %v1054 = vpop.xlane.xlu0 %1053
      %v1055 = vmax.f32 %v886, %v888
      %1056 = vmax.xlane.f32.xlu0 %v1055
      %v1057 = vpop.xlane.xlu0 %1056
      %v1058 = vmax.f32 %v892, %v894
      %1059 = vmax.xlane.f32.xlu0 %v1058
      %v1060 = vpop.xlane.xlu0 %1059
      %v1061 = vmax.f32 %v896, %v898
      %1062 = vmax.xlane.f32.xlu0 %v1061
      %v1063 = vpop.xlane.xlu0 %1062
      %v1064 = vmax.f32 %v902, %v904
      %1065 = vmax.xlane.f32.xlu0 %v1064
      %v1066 = vpop.xlane.xlu0 %1065
      %v1067 = vmax.f32 %v906, %v908
      %1068 = vmax.xlane.f32.xlu0 %v1067
      %v1069 = vpop.xlane.xlu0 %1068
      %v1070 = vmax.f32 %v912, %v914
      %1071 = vmax.xlane.f32.xlu0 %v1070
      %v1072 = vpop.xlane.xlu0 %1071
      %v1073 = vmax.f32 %v916, %v918
      %1074 = vmax.xlane.f32.xlu0 %v1073
      %v1075 = vpop.xlane.xlu0 %1074
      %v1076 = vmax.f32 %v922, %v924
      %1077 = vmax.xlane.f32.xlu0 %v1076
      %v1078 = vpop.xlane.xlu0 %1077
      %v1079 = vmax.f32 %v926, %v928
      %1080 = vmax.xlane.f32.xlu0 %v1079
      %v1081 = vpop.xlane.xlu0 %1080
      %v1082 = vmax.f32 %v932, %v934
      %1083 = vmax.xlane.f32.xlu0 %v1082
      %v1084 = vpop.xlane.xlu0 %1083
      %v1085 = vmax.f32 %v936, %v938
      %1086 = vmax.xlane.f32.xlu0 %v1085
      %v1087 = vpop.xlane.xlu0 %1086
      %v1088 = vmax.f32 %v942, %v944
      %1089 = vmax.xlane.f32.xlu0 %v1088
      %v1090 = vpop.xlane.xlu0 %1089
      %v1091 = vmax.f32 %v946, %v948
      %1092 = vmax.xlane.f32.xlu0 %v1091
      %v1093 = vpop.xlane.xlu0 %1092
      %v1094 = vmax.f32 %v952, %v954
      %1095 = vmax.xlane.f32.xlu0 %v1094
      %v1096 = vpop.xlane.xlu0 %1095
      %v1097 = vmax.f32 %v956, %v958
      %1098 = vmax.xlane.f32.xlu0 %v1097
      %v1099 = vpop.xlane.xlu0 %1098
      %v1100 = vmax.f32 %v962, %v964
      %1101 = vmax.xlane.f32.xlu0 %v1100
      %v1102 = vpop.xlane.xlu0 %1101
      %v1103 = vmax.f32 %v966, %v968
      %1104 = vmax.xlane.f32.xlu0 %v1103
      %v1105 = vpop.xlane.xlu0 %1104
      %v1106 = vmax.f32 %v972, %v974
      %1107 = vmax.xlane.f32.xlu0 %v1106
      %v1108 = vpop.xlane.xlu0 %1107
      %v1109 = vmax.f32 %v976, %v978
      %1110 = vmax.xlane.f32.xlu0 %v1109
      %v1111 = vpop.xlane.xlu0 %1110
      %v1112 = vmax.f32 %v982, %v984
      %1113 = vmax.xlane.f32.xlu0 %v1112
      %v1114 = vpop.xlane.xlu0 %1113
      %v1115 = vmax.f32 %v986, %v988
      %1116 = vmax.xlane.f32.xlu0 %v1115
      %v1117 = vpop.xlane.xlu0 %1116
      %v1118 = vmax.f32 %v990, %v1024
      %v1119 = vmax.f32 %v991, %v1027
      %v1120 = vmax.f32 %v992, %v1030
      %v1121 = vmax.f32 %v993, %v1033
      %v1122 = vmax.f32 %v994, %v1036
      %v1123 = vmax.f32 %v995, %v1039
      %v1124 = vmax.f32 %v996, %v1042
      %v1125 = vmax.f32 %v997, %v1045
      %v1126 = vmax.f32 %v998, %v1048
      %v1127 = vmax.f32 %v999, %v1051
      %v1128 = vmax.f32 %v1000, %v1054
      %v1129 = vmax.f32 %v1001, %v1057
      %v1130 = vmax.f32 %v1002, %v1060
      %v1131 = vmax.f32 %v1003, %v1063
      %v1132 = vmax.f32 %v1004, %v1066
      %v1133 = vmax.f32 %v1005, %v1069
      %v1134 = vmax.f32 %v1006, %v1072
      %v1135 = vmax.f32 %v1007, %v1075
      %v1136 = vmax.f32 %v1008, %v1078
      %v1137 = vmax.f32 %v1009, %v1081
      %v1138 = vmax.f32 %v1010, %v1084
      %v1139 = vmax.f32 %v1011, %v1087
      %v1140 = vmax.f32 %v1012, %v1090
      %v1141 = vmax.f32 %v1013, %v1093
      %v1142 = vmax.f32 %v1014, %v1096
      %v1143 = vmax.f32 %v1015, %v1099
      %v1144 = vmax.f32 %v1016, %v1102
      %v1145 = vmax.f32 %v1017, %v1105
      %v1146 = vmax.f32 %v1018, %v1108
      %v1147 = vmax.f32 %v1019, %v1111
      %v1148 = vmax.f32 %v1020, %v1114
      %v1149 = vmax.f32 %v1021, %v1117
      %v1150 = vsub.f32 %v990, %v1118
      %v1151 = vsub.f32 %v991, %v1119
      %v1152 = vsub.f32 %v992, %v1120
      %v1153 = vsub.f32 %v993, %v1121
      %v1154 = vsub.f32 %v994, %v1122
      %v1155 = vsub.f32 %v995, %v1123
      %v1156 = vsub.f32 %v996, %v1124
      %v1157 = vsub.f32 %v997, %v1125
      %v1158 = vsub.f32 %v998, %v1126
      %v1159 = vsub.f32 %v999, %v1127
      %v1160 = vsub.f32 %v1000, %v1128
      %v1161 = vsub.f32 %v1001, %v1129
      %v1162 = vsub.f32 %v1002, %v1130
      %v1163 = vsub.f32 %v1003, %v1131
      %v1164 = vsub.f32 %v1004, %v1132
      %v1165 = vsub.f32 %v1005, %v1133
      %v1166 = vsub.f32 %v1006, %v1134
      %v1167 = vsub.f32 %v1007, %v1135
      %v1168 = vsub.f32 %v1008, %v1136
      %v1169 = vsub.f32 %v1009, %v1137
      %v1170 = vsub.f32 %v1010, %v1138
      %v1171 = vsub.f32 %v1011, %v1139
      %v1172 = vsub.f32 %v1012, %v1140
      %v1173 = vsub.f32 %v1013, %v1141
      %v1174 = vsub.f32 %v1014, %v1142
      %v1175 = vsub.f32 %v1015, %v1143
      %v1176 = vsub.f32 %v1016, %v1144
      %v1177 = vsub.f32 %v1017, %v1145
      %v1178 = vsub.f32 %v1018, %v1146
      %v1179 = vsub.f32 %v1019, %v1147
      %v1180 = vsub.f32 %v1020, %v1148
      %v1181 = vsub.f32 %v1021, %v1149
      %v1182 = vmul.f32 %v1150, 1.442695
      %v1183 = vpow.pop %v1182
      %v1184 = vmul.f32 %v1151, 1.442695
      %v1185 = vpow.pop %v1184
      %v1186 = vmul.f32 %v1152, 1.442695
      %v1187 = vpow.pop %v1186
      %v1188 = vmul.f32 %v1153, 1.442695
      %v1189 = vpow.pop %v1188
      %v1190 = vmul.f32 %v1154, 1.442695
      %v1191 = vpow.pop %v1190
      %v1192 = vmul.f32 %v1155, 1.442695
      %v1193 = vpow.pop %v1192
      %v1194 = vmul.f32 %v1156, 1.442695
      %v1195 = vpow.pop %v1194
      %v1196 = vmul.f32 %v1157, 1.442695
      %v1197 = vpow.pop %v1196
      %v1198 = vmul.f32 %v1158, 1.442695
      %v1199 = vpow.pop %v1198
      %v1200 = vmul.f32 %v1159, 1.442695
      %v1201 = vpow.pop %v1200
      %v1202 = vmul.f32 %v1160, 1.442695
      %v1203 = vpow.pop %v1202
      %v1204 = vmul.f32 %v1161, 1.442695
      %v1205 = vpow.pop %v1204
      %v1206 = vmul.f32 %v1162, 1.442695
      %v1207 = vpow.pop %v1206
      %v1208 = vmul.f32 %v1163, 1.442695
      %v1209 = vpow.pop %v1208
      %v1210 = vmul.f32 %v1164, 1.442695
      %v1211 = vpow.pop %v1210
      %v1212 = vmul.f32 %v1165, 1.442695
      %v1213 = vpow.pop %v1212
      %v1214 = vmul.f32 %v1166, 1.442695
      %v1215 = vpow.pop %v1214
      %v1216 = vmul.f32 %v1167, 1.442695
      %v1217 = vpow.pop %v1216
      %v1218 = vmul.f32 %v1168, 1.442695
      %v1219 = vpow.pop %v1218
      %v1220 = vmul.f32 %v1169, 1.442695
      %v1221 = vpow.pop %v1220
      %v1222 = vmul.f32 %v1170, 1.442695
      %v1223 = vpow.pop %v1222
      %v1224 = vmul.f32 %v1171, 1.442695
      %v1225 = vpow.pop %v1224
      %v1226 = vmul.f32 %v1172, 1.442695
      %v1227 = vpow.pop %v1226
      %v1228 = vmul.f32 %v1173, 1.442695
      %v1229 = vpow.pop %v1228
      %v1230 = vmul.f32 %v1174, 1.442695
      %v1231 = vpow.pop %v1230
      %v1232 = vmul.f32 %v1175, 1.442695
      %v1233 = vpow.pop %v1232
      %v1234 = vmul.f32 %v1176, 1.442695
      %v1235 = vpow.pop %v1234
      %v1236 = vmul.f32 %v1177, 1.442695
      %v1237 = vpow.pop %v1236
      %v1238 = vmul.f32 %v1178, 1.442695
      %v1239 = vpow.pop %v1238
      %v1240 = vmul.f32 %v1179, 1.442695
      %v1241 = vpow.pop %v1240
      %v1242 = vmul.f32 %v1180, 1.442695
      %v1243 = vpow.pop %v1242
      %v1244 = vmul.f32 %v1181, 1.442695
      %v1245 = vpow.pop %v1244
      %1247 = vset.pattern.permute.xlu0 0
      %1248 = vperm.xlu0 %1247, %v1118
      %v1249 = vpop.permute.xlu0 %1248
      %1252 = vset.pattern.permute.xlu0 0
      %1253 = vperm.xlu0 %1252, %v1119
      %v1254 = vpop.permute.xlu0 %1253
      %1257 = vset.pattern.permute.xlu0 0
      %1258 = vperm.xlu0 %1257, %v1120
      %v1259 = vpop.permute.xlu0 %1258
      %1262 = vset.pattern.permute.xlu0 0
      %1263 = vperm.xlu0 %1262, %v1121
      %v1264 = vpop.permute.xlu0 %1263
      %1267 = vset.pattern.permute.xlu0 0
      %1268 = vperm.xlu0 %1267, %v1122
      %v1269 = vpop.permute.xlu0 %1268
      %1272 = vset.pattern.permute.xlu0 0
      %1273 = vperm.xlu0 %1272, %v1123
      %v1274 = vpop.permute.xlu0 %1273
      %1277 = vset.pattern.permute.xlu0 0
      %1278 = vperm.xlu0 %1277, %v1124
      %v1279 = vpop.permute.xlu0 %1278
      %1282 = vset.pattern.permute.xlu0 0
      %1283 = vperm.xlu0 %1282, %v1125
      %v1284 = vpop.permute.xlu0 %1283
      %1287 = vset.pattern.permute.xlu0 0
      %1288 = vperm.xlu0 %1287, %v1126
      %v1289 = vpop.permute.xlu0 %1288
      %1292 = vset.pattern.permute.xlu0 0
      %1293 = vperm.xlu0 %1292, %v1127
      %v1294 = vpop.permute.xlu0 %1293
      %1297 = vset.pattern.permute.xlu0 0
      %1298 = vperm.xlu0 %1297, %v1128
      %v1299 = vpop.permute.xlu0 %1298
      %1302 = vset.pattern.permute.xlu0 0
      %1303 = vperm.xlu0 %1302, %v1129
      %v1304 = vpop.permute.xlu0 %1303
      %1307 = vset.pattern.permute.xlu0 0
      %1308 = vperm.xlu0 %1307, %v1130
      %v1309 = vpop.permute.xlu0 %1308
      %1312 = vset.pattern.permute.xlu0 0
      %1313 = vperm.xlu0 %1312, %v1131
      %v1314 = vpop.permute.xlu0 %1313
      %1317 = vset.pattern.permute.xlu0 0
      %1318 = vperm.xlu0 %1317, %v1132
      %v1319 = vpop.permute.xlu0 %1318
      %1322 = vset.pattern.permute.xlu0 0
      %1323 = vperm.xlu0 %1322, %v1133
      %v1324 = vpop.permute.xlu0 %1323
      %1327 = vset.pattern.permute.xlu0 0
      %1328 = vperm.xlu0 %1327, %v1134
      %v1329 = vpop.permute.xlu0 %1328
      %1332 = vset.pattern.permute.xlu0 0
      %1333 = vperm.xlu0 %1332, %v1135
      %v1334 = vpop.permute.xlu0 %1333
      %1337 = vset.pattern.permute.xlu0 0
      %1338 = vperm.xlu0 %1337, %v1136
      %v1339 = vpop.permute.xlu0 %1338
      %1342 = vset.pattern.permute.xlu0 0
      %1343 = vperm.xlu0 %1342, %v1137
      %v1344 = vpop.permute.xlu0 %1343
      %1347 = vset.pattern.permute.xlu0 0
      %1348 = vperm.xlu0 %1347, %v1138
      %v1349 = vpop.permute.xlu0 %1348
      %1352 = vset.pattern.permute.xlu0 0
      %1353 = vperm.xlu0 %1352, %v1139
      %v1354 = vpop.permute.xlu0 %1353
      %1357 = vset.pattern.permute.xlu0 0
      %1358 = vperm.xlu0 %1357, %v1140
      %v1359 = vpop.permute.xlu0 %1358
      %1362 = vset.pattern.permute.xlu0 0
      %1363 = vperm.xlu0 %1362, %v1141
      %v1364 = vpop.permute.xlu0 %1363
      %1367 = vset.pattern.permute.xlu0 0
      %1368 = vperm.xlu0 %1367, %v1142
      %v1369 = vpop.permute.xlu0 %1368
      %1372 = vset.pattern.permute.xlu0 0
      %1373 = vperm.xlu0 %1372, %v1143
      %v1374 = vpop.permute.xlu0 %1373
      %1377 = vset.pattern.permute.xlu0 0
      %1378 = vperm.xlu0 %1377, %v1144
      %v1379 = vpop.permute.xlu0 %1378
      %1382 = vset.pattern.permute.xlu0 0
      %1383 = vperm.xlu0 %1382, %v1145
      %v1384 = vpop.permute.xlu0 %1383
      %1387 = vset.pattern.permute.xlu0 0
      %1388 = vperm.xlu0 %1387, %v1146
      %v1389 = vpop.permute.xlu0 %1388
      %1392 = vset.pattern.permute.xlu0 0
      %1393 = vperm.xlu0 %1392, %v1147
      %v1394 = vpop.permute.xlu0 %1393
      %1397 = vset.pattern.permute.xlu0 0
      %1398 = vperm.xlu0 %1397, %v1148
      %v1399 = vpop.permute.xlu0 %1398
      %1402 = vset.pattern.permute.xlu0 0
      %1403 = vperm.xlu0 %1402, %v1149
      %v1404 = vpop.permute.xlu0 %1403
      %v1406 = vsub.f32 %v832, %v1249
      %v1407 = vsub.f32 %v834, %v1249
      %v1408 = vsub.f32 %v836, %v1254
      %v1409 = vsub.f32 %v838, %v1254
      %v1410 = vsub.f32 %v842, %v1259
      %v1411 = vsub.f32 %v844, %v1259
      %v1412 = vsub.f32 %v846, %v1264
      %v1413 = vsub.f32 %v848, %v1264
      %v1414 = vsub.f32 %v852, %v1269
      %v1415 = vsub.f32 %v854, %v1269
      %v1416 = vsub.f32 %v856, %v1274
      %v1417 = vsub.f32 %v858, %v1274
      %v1418 = vsub.f32 %v862, %v1279
      %v1419 = vsub.f32 %v864, %v1279
      %v1420 = vsub.f32 %v866, %v1284
      %v1421 = vsub.f32 %v868, %v1284
      %v1422 = vsub.f32 %v872, %v1289
      %v1423 = vsub.f32 %v874, %v1289
      %v1424 = vsub.f32 %v876, %v1294
      %v1425 = vsub.f32 %v878, %v1294
      %v1426 = vsub.f32 %v882, %v1299
      %v1427 = vsub.f32 %v884, %v1299
      %v1428 = vsub.f32 %v886, %v1304
      %v1429 = vsub.f32 %v888, %v1304
      %v1430 = vsub.f32 %v892, %v1309
      %v1431 = vsub.f32 %v894, %v1309
      %v1432 = vsub.f32 %v896, %v1314
      %v1433 = vsub.f32 %v898, %v1314
      %v1434 = vsub.f32 %v902, %v1319
      %v1435 = vsub.f32 %v904, %v1319
      %v1436 = vsub.f32 %v906, %v1324
      %v1437 = vsub.f32 %v908, %v1324
      %v1438 = vsub.f32 %v912, %v1329
      %v1439 = vsub.f32 %v914, %v1329
      %v1440 = vsub.f32 %v916, %v1334
      %v1441 = vsub.f32 %v918, %v1334
      %v1442 = vsub.f32 %v922, %v1339
      %v1443 = vsub.f32 %v924, %v1339
      %v1444 = vsub.f32 %v926, %v1344
      %v1445 = vsub.f32 %v928, %v1344
      %v1446 = vsub.f32 %v932, %v1349
      %v1447 = vsub.f32 %v934, %v1349
      %v1448 = vsub.f32 %v936, %v1354
      %v1449 = vsub.f32 %v938, %v1354
      %v1450 = vsub.f32 %v942, %v1359
      %v1451 = vsub.f32 %v944, %v1359
      %v1452 = vsub.f32 %v946, %v1364
      %v1453 = vsub.f32 %v948, %v1364
      %v1454 = vsub.f32 %v952, %v1369
      %v1455 = vsub.f32 %v954, %v1369
      %v1456 = vsub.f32 %v956, %v1374
      %v1457 = vsub.f32 %v958, %v1374
      %v1458 = vsub.f32 %v962, %v1379
      %v1459 = vsub.f32 %v964, %v1379
      %v1460 = vsub.f32 %v966, %v1384
      %v1461 = vsub.f32 %v968, %v1384
      %v1462 = vsub.f32 %v972, %v1389
      %v1463 = vsub.f32 %v974, %v1389
      %v1464 = vsub.f32 %v976, %v1394
      %v1465 = vsub.f32 %v978, %v1394
      %v1466 = vsub.f32 %v982, %v1399
      %v1467 = vsub.f32 %v984, %v1399
      %v1468 = vsub.f32 %v986, %v1404
      %v1469 = vsub.f32 %v988, %v1404
      %v1470 = vpack.c.bf16 %v1408, %v1406
      %v1471 = vpack.c.bf16 %v1409, %v1407
      %v1472 = vpack.c.bf16 %v1412, %v1410
      %v1473 = vpack.c.bf16 %v1413, %v1411
      %v1474 = vpack.c.bf16 %v1416, %v1414
      %v1475 = vpack.c.bf16 %v1417, %v1415
      %v1476 = vpack.c.bf16 %v1420, %v1418
      %v1477 = vpack.c.bf16 %v1421, %v1419
      %v1478 = vpack.c.bf16 %v1424, %v1422
      %v1479 = vpack.c.bf16 %v1425, %v1423
      %v1480 = vpack.c.bf16 %v1428, %v1426
      %v1481 = vpack.c.bf16 %v1429, %v1427
      %v1482 = vpack.c.bf16 %v1432, %v1430
      %v1483 = vpack.c.bf16 %v1433, %v1431
      %v1484 = vpack.c.bf16 %v1436, %v1434
      %v1485 = vpack.c.bf16 %v1437, %v1435
      %v1486 = vpack.c.bf16 %v1440, %v1438
      %v1487 = vpack.c.bf16 %v1441, %v1439
      %v1488 = vpack.c.bf16 %v1444, %v1442
      %v1489 = vpack.c.bf16 %v1445, %v1443
      %v1490 = vpack.c.bf16 %v1448, %v1446
      %v1491 = vpack.c.bf16 %v1449, %v1447
      %v1492 = vpack.c.bf16 %v1452, %v1450
      %v1493 = vpack.c.bf16 %v1453, %v1451
      %v1494 = vpack.c.bf16 %v1456, %v1454
      %v1495 = vpack.c.bf16 %v1457, %v1455
      %v1496 = vpack.c.bf16 %v1460, %v1458
      %v1497 = vpack.c.bf16 %v1461, %v1459
      %v1498 = vpack.c.bf16 %v1464, %v1462
      %v1499 = vpack.c.bf16 %v1465, %v1463
      %v1500 = vpack.c.bf16 %v1468, %v1466
      %v1501 = vpack.c.bf16 %v1469, %v1467
      %v1503 = vmul.bf16 %v1470, 1069105081
      %v1504 = vpow.bf16.pop %v1503
      %v1506 = vmul.bf16 %v1471, 1069105081
      %v1507 = vpow.bf16.pop %v1506
      %v1509 = vmul.bf16 %v1472, 1069105081
      %v1510 = vpow.bf16.pop %v1509
      %v1512 = vmul.bf16 %v1473, 1069105081
      %v1513 = vpow.bf16.pop %v1512
      %v1515 = vmul.bf16 %v1474, 1069105081
      %v1516 = vpow.bf16.pop %v1515
      %v1518 = vmul.bf16 %v1475, 1069105081
      %v1519 = vpow.bf16.pop %v1518
      %v1521 = vmul.bf16 %v1476, 1069105081
      %v1522 = vpow.bf16.pop %v1521
      %v1524 = vmul.bf16 %v1477, 1069105081
      %v1525 = vpow.bf16.pop %v1524
      %v1527 = vmul.bf16 %v1478, 1069105081
      %v1528 = vpow.bf16.pop %v1527
      %v1530 = vmul.bf16 %v1479, 1069105081
      %v1531 = vpow.bf16.pop %v1530
      %v1533 = vmul.bf16 %v1480, 1069105081
      %v1534 = vpow.bf16.pop %v1533
      %v1536 = vmul.bf16 %v1481, 1069105081
      %v1537 = vpow.bf16.pop %v1536
      %v1539 = vmul.bf16 %v1482, 1069105081
      %v1540 = vpow.bf16.pop %v1539
      %v1542 = vmul.bf16 %v1483, 1069105081
      %v1543 = vpow.bf16.pop %v1542
      %v1545 = vmul.bf16 %v1484, 1069105081
      %v1546 = vpow.bf16.pop %v1545
      %v1548 = vmul.bf16 %v1485, 1069105081
      %v1549 = vpow.bf16.pop %v1548
      %v1551 = vmul.bf16 %v1486, 1069105081
      %v1552 = vpow.bf16.pop %v1551
      %v1554 = vmul.bf16 %v1487, 1069105081
      %v1555 = vpow.bf16.pop %v1554
      %v1557 = vmul.bf16 %v1488, 1069105081
      %v1558 = vpow.bf16.pop %v1557
      %v1560 = vmul.bf16 %v1489, 1069105081
      %v1561 = vpow.bf16.pop %v1560
      %v1563 = vmul.bf16 %v1490, 1069105081
      %v1564 = vpow.bf16.pop %v1563
      %v1566 = vmul.bf16 %v1491, 1069105081
      %v1567 = vpow.bf16.pop %v1566
      %v1569 = vmul.bf16 %v1492, 1069105081
      %v1570 = vpow.bf16.pop %v1569
      %v1572 = vmul.bf16 %v1493, 1069105081
      %v1573 = vpow.bf16.pop %v1572
      %v1575 = vmul.bf16 %v1494, 1069105081
      %v1576 = vpow.bf16.pop %v1575
      %v1578 = vmul.bf16 %v1495, 1069105081
      %v1579 = vpow.bf16.pop %v1578
      %v1581 = vmul.bf16 %v1496, 1069105081
      %v1582 = vpow.bf16.pop %v1581
      %v1584 = vmul.bf16 %v1497, 1069105081
      %v1585 = vpow.bf16.pop %v1584
      %v1587 = vmul.bf16 %v1498, 1069105081
      %v1588 = vpow.bf16.pop %v1587
      %v1590 = vmul.bf16 %v1499, 1069105081
      %v1591 = vpow.bf16.pop %v1590
      %v1593 = vmul.bf16 %v1500, 1069105081
      %v1594 = vpow.bf16.pop %v1593
      %v1596 = vmul.bf16 %v1501, 1069105081
      %v1597 = vpow.bf16.pop %v1596
      %v1598 = vld [vmem:[#allocation3] sm:$0xff]
      %v1599 = vld [vmem:[#allocation3 + $0x8] sm:$0xff]
      %v1600 = vld [vmem:[#allocation3 + $0x10] sm:$0xff]
      %v1601 = vld [vmem:[#allocation3 + $0x18] sm:$0xff]
      %v1602 = vld [vmem:[#allocation3 + $0x20] sm:$0xff]
      %v1603 = vld [vmem:[#allocation3 + $0x28] sm:$0xff]
      %v1604 = vld [vmem:[#allocation3 + $0x30] sm:$0xff]
      %v1605 = vld [vmem:[#allocation3 + $0x38] sm:$0xff]
      %v1606 = vld [vmem:[#allocation3 + $0x40] sm:$0xff]
      %v1607 = vld [vmem:[#allocation3 + $0x48] sm:$0xff]
      %v1608 = vld [vmem:[#allocation3 + $0x50] sm:$0xff]
      %v1609 = vld [vmem:[#allocation3 + $0x58] sm:$0xff]
      %v1610 = vld [vmem:[#allocation3 + $0x60] sm:$0xff]
      %v1611 = vld [vmem:[#allocation3 + $0x68] sm:$0xff]
      %v1612 = vld [vmem:[#allocation3 + $0x70] sm:$0xff]
      %v1613 = vld [vmem:[#allocation3 + $0x78] sm:$0xff]
      %v1614 = vld [vmem:[#allocation3 + $0x80] sm:$0xff]
      %v1615 = vld [vmem:[#allocation3 + $0x88] sm:$0xff]
      %v1616 = vld [vmem:[#allocation3 + $0x90] sm:$0xff]
      %v1617 = vld [vmem:[#allocation3 + $0x98] sm:$0xff]
      %v1618 = vld [vmem:[#allocation3 + $0xa0] sm:$0xff]
      %v1619 = vld [vmem:[#allocation3 + $0xa8] sm:$0xff]
      %v1620 = vld [vmem:[#allocation3 + $0xb0] sm:$0xff]
      %v1621 = vld [vmem:[#allocation3 + $0xb8] sm:$0xff]
      %v1622 = vld [vmem:[#allocation3 + $0xc0] sm:$0xff]
      %v1623 = vld [vmem:[#allocation3 + $0xc8] sm:$0xff]
      %v1624 = vld [vmem:[#allocation3 + $0xd0] sm:$0xff]
      %v1625 = vld [vmem:[#allocation3 + $0xd8] sm:$0xff]
      %v1626 = vld [vmem:[#allocation3 + $0xe0] sm:$0xff]
      %v1627 = vld [vmem:[#allocation3 + $0xe8] sm:$0xff]
      %v1628 = vld [vmem:[#allocation3 + $0xf0] sm:$0xff]
      %v1629 = vld [vmem:[#allocation3 + $0xf8] sm:$0xff]
      %v1630 = vmul.f32 %v1183, %v1598
      %v1631 = vmul.f32 %v1185, %v1599
      %v1632 = vmul.f32 %v1187, %v1600
      %v1633 = vmul.f32 %v1189, %v1601
      %v1634 = vmul.f32 %v1191, %v1602
      %v1635 = vmul.f32 %v1193, %v1603
      %v1636 = vmul.f32 %v1195, %v1604
      %v1637 = vmul.f32 %v1197, %v1605
      %v1638 = vmul.f32 %v1199, %v1606
      %v1639 = vmul.f32 %v1201, %v1607
      %v1640 = vmul.f32 %v1203, %v1608
      %v1641 = vmul.f32 %v1205, %v1609
      %v1642 = vmul.f32 %v1207, %v1610
      %v1643 = vmul.f32 %v1209, %v1611
      %v1644 = vmul.f32 %v1211, %v1612
      %v1645 = vmul.f32 %v1213, %v1613
      %v1646 = vmul.f32 %v1215, %v1614
      %v1647 = vmul.f32 %v1217, %v1615
      %v1648 = vmul.f32 %v1219, %v1616
      %v1649 = vmul.f32 %v1221, %v1617
      %v1650 = vmul.f32 %v1223, %v1618
      %v1651 = vmul.f32 %v1225, %v1619
      %v1652 = vmul.f32 %v1227, %v1620
      %v1653 = vmul.f32 %v1229, %v1621
      %v1654 = vmul.f32 %v1231, %v1622
      %v1655 = vmul.f32 %v1233, %v1623
      %v1656 = vmul.f32 %v1235, %v1624
      %v1657 = vmul.f32 %v1237, %v1625
      %v1658 = vmul.f32 %v1239, %v1626
      %v1659 = vmul.f32 %v1241, %v1627
      %v1660 = vmul.f32 %v1243, %v1628
      %v1661 = vmul.f32 %v1245, %v1629
      %v1662 = vunpack.c.l.bf16 %v1504
      %v1663 = vunpack.c.l.bf16 %v1507
      %v1664 = vunpack.c.h.bf16 %v1504
      %v1665 = vunpack.c.h.bf16 %v1507
      %v1666 = vunpack.c.l.bf16 %v1510
      %v1667 = vunpack.c.l.bf16 %v1513
      %v1668 = vunpack.c.h.bf16 %v1510
      %v1669 = vunpack.c.h.bf16 %v1513
      %v1670 = vunpack.c.l.bf16 %v1516
      %v1671 = vunpack.c.l.bf16 %v1519
      %v1672 = vunpack.c.h.bf16 %v1516
      %v1673 = vunpack.c.h.bf16 %v1519
      %v1674 = vunpack.c.l.bf16 %v1522
      %v1675 = vunpack.c.l.bf16 %v1525
      %v1676 = vunpack.c.h.bf16 %v1522
      %v1677 = vunpack.c.h.bf16 %v1525
      %v1678 = vunpack.c.l.bf16 %v1528
      %v1679 = vunpack.c.l.bf16 %v1531
      %v1680 = vunpack.c.h.bf16 %v1528
      %v1681 = vunpack.c.h.bf16 %v1531
      %v1682 = vunpack.c.l.bf16 %v1534
      %v1683 = vunpack.c.l.bf16 %v1537
      %v1684 = vunpack.c.h.bf16 %v1534
      %v1685 = vunpack.c.h.bf16 %v1537
      %v1686 = vunpack.c.l.bf16 %v1540
      %v1687 = vunpack.c.l.bf16 %v1543
      %v1688 = vunpack.c.h.bf16 %v1540
      %v1689 = vunpack.c.h.bf16 %v1543
      %v1690 = vunpack.c.l.bf16 %v1546
      %v1691 = vunpack.c.l.bf16 %v1549
      %v1692 = vunpack.c.h.bf16 %v1546
      %v1693 = vunpack.c.h.bf16 %v1549
      %v1694 = vunpack.c.l.bf16 %v1552
      %v1695 = vunpack.c.l.bf16 %v1555
      %v1696 = vunpack.c.h.bf16 %v1552
      %v1697 = vunpack.c.h.bf16 %v1555
      %v1698 = vunpack.c.l.bf16 %v1558
      %v1699 = vunpack.c.l.bf16 %v1561
      %v1700 = vunpack.c.h.bf16 %v1558
      %v1701 = vunpack.c.h.bf16 %v1561
      %v1702 = vunpack.c.l.bf16 %v1564
      %v1703 = vunpack.c.l.bf16 %v1567
      %v1704 = vunpack.c.h.bf16 %v1564
      %v1705 = vunpack.c.h.bf16 %v1567
      %v1706 = vunpack.c.l.bf16 %v1570
      %v1707 = vunpack.c.l.bf16 %v1573
      %v1708 = vunpack.c.h.bf16 %v1570
      %v1709 = vunpack.c.h.bf16 %v1573
      %v1710 = vunpack.c.l.bf16 %v1576
      %v1711 = vunpack.c.l.bf16 %v1579
      %v1712 = vunpack.c.h.bf16 %v1576
      %v1713 = vunpack.c.h.bf16 %v1579
      %v1714 = vunpack.c.l.bf16 %v1582
      %v1715 = vunpack.c.l.bf16 %v1585
      %v1716 = vunpack.c.h.bf16 %v1582
      %v1717 = vunpack.c.h.bf16 %v1585
      %v1718 = vunpack.c.l.bf16 %v1588
      %v1719 = vunpack.c.l.bf16 %v1591
      %v1720 = vunpack.c.h.bf16 %v1588
      %v1721 = vunpack.c.h.bf16 %v1591
      %v1722 = vunpack.c.l.bf16 %v1594
      %v1723 = vunpack.c.l.bf16 %v1597
      %v1724 = vunpack.c.h.bf16 %v1594
      %v1725 = vunpack.c.h.bf16 %v1597
      %v1726 = vadd.f32 %v1662, %v1663
      %1727 = vadd.xlane.f32.xlu0 %v1726
      %v1728 = vpop.xlane.xlu0 %1727
      %v1729 = vadd.f32 %v1664, %v1665
      %1730 = vadd.xlane.f32.xlu0 %v1729
      %v1731 = vpop.xlane.xlu0 %1730
      %v1732 = vadd.f32 %v1666, %v1667
      %1733 = vadd.xlane.f32.xlu0 %v1732
      %v1734 = vpop.xlane.xlu0 %1733
      %v1735 = vadd.f32 %v1668, %v1669
      %1736 = vadd.xlane.f32.xlu0 %v1735
      %v1737 = vpop.xlane.xlu0 %1736
      %v1738 = vadd.f32 %v1670, %v1671
      %1739 = vadd.xlane.f32.xlu0 %v1738
      %v1740 = vpop.xlane.xlu0 %1739
      %v1741 = vadd.f32 %v1672, %v1673
      %1742 = vadd.xlane.f32.xlu0 %v1741
      %v1743 = vpop.xlane.xlu0 %1742
      %v1744 = vadd.f32 %v1674, %v1675
      %1745 = vadd.xlane.f32.xlu0 %v1744
      %v1746 = vpop.xlane.xlu0 %1745
      %v1747 = vadd.f32 %v1676, %v1677
      %1748 = vadd.xlane.f32.xlu0 %v1747
      %v1749 = vpop.xlane.xlu0 %1748
      %v1750 = vadd.f32 %v1678, %v1679
      %1751 = vadd.xlane.f32.xlu0 %v1750
      %v1752 = vpop.xlane.xlu0 %1751
      %v1753 = vadd.f32 %v1680, %v1681
      %1754 = vadd.xlane.f32.xlu0 %v1753
      %v1755 = vpop.xlane.xlu0 %1754
      %v1756 = vadd.f32 %v1682, %v1683
      %1757 = vadd.xlane.f32.xlu0 %v1756
      %v1758 = vpop.xlane.xlu0 %1757
      %v1759 = vadd.f32 %v1684, %v1685
      %1760 = vadd.xlane.f32.xlu0 %v1759
      %v1761 = vpop.xlane.xlu0 %1760
      %v1762 = vadd.f32 %v1686, %v1687
      %1763 = vadd.xlane.f32.xlu0 %v1762
      %v1764 = vpop.xlane.xlu0 %1763
      %v1765 = vadd.f32 %v1688, %v1689
      %1766 = vadd.xlane.f32.xlu0 %v1765
      %v1767 = vpop.xlane.xlu0 %1766
      %v1768 = vadd.f32 %v1690, %v1691
      %1769 = vadd.xlane.f32.xlu0 %v1768
      %v1770 = vpop.xlane.xlu0 %1769
      %v1771 = vadd.f32 %v1692, %v1693
      %1772 = vadd.xlane.f32.xlu0 %v1771
      %v1773 = vpop.xlane.xlu0 %1772
      %v1774 = vadd.f32 %v1694, %v1695
      %1775 = vadd.xlane.f32.xlu0 %v1774
      %v1776 = vpop.xlane.xlu0 %1775
      %v1777 = vadd.f32 %v1696, %v1697
      %1778 = vadd.xlane.f32.xlu0 %v1777
      %v1779 = vpop.xlane.xlu0 %1778
      %v1780 = vadd.f32 %v1698, %v1699
      %1781 = vadd.xlane.f32.xlu0 %v1780
      %v1782 = vpop.xlane.xlu0 %1781
      %v1783 = vadd.f32 %v1700, %v1701
      %1784 = vadd.xlane.f32.xlu0 %v1783
      %v1785 = vpop.xlane.xlu0 %1784
      %v1786 = vadd.f32 %v1702, %v1703
      %1787 = vadd.xlane.f32.xlu0 %v1786
      %v1788 = vpop.xlane.xlu0 %1787
      %v1789 = vadd.f32 %v1704, %v1705
      %1790 = vadd.xlane.f32.xlu0 %v1789
      %v1791 = vpop.xlane.xlu0 %1790
      %v1792 = vadd.f32 %v1706, %v1707
      %1793 = vadd.xlane.f32.xlu0 %v1792
      %v1794 = vpop.xlane.xlu0 %1793
      %v1795 = vadd.f32 %v1708, %v1709
      %1796 = vadd.xlane.f32.xlu0 %v1795
      %v1797 = vpop.xlane.xlu0 %1796
      %v1798 = vadd.f32 %v1710, %v1711
      %1799 = vadd.xlane.f32.xlu0 %v1798
      %v1800 = vpop.xlane.xlu0 %1799
      %v1801 = vadd.f32 %v1712, %v1713
      %1802 = vadd.xlane.f32.xlu0 %v1801
      %v1803 = vpop.xlane.xlu0 %1802
      %v1804 = vadd.f32 %v1714, %v1715
      %1805 = vadd.xlane.f32.xlu0 %v1804
      %v1806 = vpop.xlane.xlu0 %1805
      %v1807 = vadd.f32 %v1716, %v1717
      %1808 = vadd.xlane.f32.xlu0 %v1807
      %v1809 = vpop.xlane.xlu0 %1808
      %v1810 = vadd.f32 %v1718, %v1719
      %1811 = vadd.xlane.f32.xlu0 %v1810
      %v1812 = vpop.xlane.xlu0 %1811
      %v1813 = vadd.f32 %v1720, %v1721
      %1814 = vadd.xlane.f32.xlu0 %v1813
      %v1815 = vpop.xlane.xlu0 %1814
      %v1816 = vadd.f32 %v1722, %v1723
      %1817 = vadd.xlane.f32.xlu0 %v1816
      %v1818 = vpop.xlane.xlu0 %1817
      %v1819 = vadd.f32 %v1724, %v1725
      %1820 = vadd.xlane.f32.xlu0 %v1819
      %v1821 = vpop.xlane.xlu0 %1820
      %v1822 = vadd.f32 %v1630, %v1728
      %v1823 = vadd.f32 %v1631, %v1731
      %v1824 = vadd.f32 %v1632, %v1734
      %v1825 = vadd.f32 %v1633, %v1737
      %v1826 = vadd.f32 %v1634, %v1740
      %v1827 = vadd.f32 %v1635, %v1743
      %v1828 = vadd.f32 %v1636, %v1746
      %v1829 = vadd.f32 %v1637, %v1749
      %v1830 = vadd.f32 %v1638, %v1752
      %v1831 = vadd.f32 %v1639, %v1755
      %v1832 = vadd.f32 %v1640, %v1758
      %v1833 = vadd.f32 %v1641, %v1761
      %v1834 = vadd.f32 %v1642, %v1764
      %v1835 = vadd.f32 %v1643, %v1767
      %v1836 = vadd.f32 %v1644, %v1770
      %v1837 = vadd.f32 %v1645, %v1773
      %v1838 = vadd.f32 %v1646, %v1776
      %v1839 = vadd.f32 %v1647, %v1779
      %v1840 = vadd.f32 %v1648, %v1782
      %v1841 = vadd.f32 %v1649, %v1785
      %v1842 = vadd.f32 %v1650, %v1788
      %v1843 = vadd.f32 %v1651, %v1791
      %v1844 = vadd.f32 %v1652, %v1794
      %v1845 = vadd.f32 %v1653, %v1797
      %v1846 = vadd.f32 %v1654, %v1800
      %v1847 = vadd.f32 %v1655, %v1803
      %v1848 = vadd.f32 %v1656, %v1806
      %v1849 = vadd.f32 %v1657, %v1809
      %v1850 = vadd.f32 %v1658, %v1812
      %v1851 = vadd.f32 %v1659, %v1815
      %v1852 = vadd.f32 %v1660, %v1818
      %v1853 = vadd.f32 %v1661, %v1821
      %vm1854 = vcmask 7168
      %1855 = vst.msk [vmem:[#allocation3] sm:$0xff] %vm1854, %v1822
      %1856 = vst.msk [vmem:[#allocation3 + $0x8] sm:$0xff] %vm1854, %v1823
      %1857 = vst.msk [vmem:[#allocation3 + $0x10] sm:$0xff] %vm1854, %v1824
      %1858 = vst.msk [vmem:[#allocation3 + $0x18] sm:$0xff] %vm1854, %v1825
      %1859 = vst.msk [vmem:[#allocation3 + $0x20] sm:$0xff] %vm1854, %v1826
      %1860 = vst.msk [vmem:[#allocation3 + $0x28] sm:$0xff] %vm1854, %v1827
      %1861 = vst.msk [vmem:[#allocation3 + $0x30] sm:$0xff] %vm1854, %v1828
      %1862 = vst.msk [vmem:[#allocation3 + $0x38] sm:$0xff] %vm1854, %v1829
      %1863 = vst.msk [vmem:[#allocation3 + $0x40] sm:$0xff] %vm1854, %v1830
      %1864 = vst.msk [vmem:[#allocation3 + $0x48] sm:$0xff] %vm1854, %v1831
      %1865 = vst.msk [vmem:[#allocation3 + $0x50] sm:$0xff] %vm1854, %v1832
      %1866 = vst.msk [vmem:[#allocation3 + $0x58] sm:$0xff] %vm1854, %v1833
      %1867 = vst.msk [vmem:[#allocation3 + $0x60] sm:$0xff] %vm1854, %v1834
      %1868 = vst.msk [vmem:[#allocation3 + $0x68] sm:$0xff] %vm1854, %v1835
      %1869 = vst.msk [vmem:[#allocation3 + $0x70] sm:$0xff] %vm1854, %v1836
      %1870 = vst.msk [vmem:[#allocation3 + $0x78] sm:$0xff] %vm1854, %v1837
      %1871 = vst.msk [vmem:[#allocation3 + $0x80] sm:$0xff] %vm1854, %v1838
      %1872 = vst.msk [vmem:[#allocation3 + $0x88] sm:$0xff] %vm1854, %v1839
      %1873 = vst.msk [vmem:[#allocation3 + $0x90] sm:$0xff] %vm1854, %v1840
      %1874 = vst.msk [vmem:[#allocation3 + $0x98] sm:$0xff] %vm1854, %v1841
      %1875 = vst.msk [vmem:[#allocation3 + $0xa0] sm:$0xff] %vm1854, %v1842
      %1876 = vst.msk [vmem:[#allocation3 + $0xa8] sm:$0xff] %vm1854, %v1843
      %1877 = vst.msk [vmem:[#allocation3 + $0xb0] sm:$0xff] %vm1854, %v1844
      %1878 = vst.msk [vmem:[#allocation3 + $0xb8] sm:$0xff] %vm1854, %v1845
      %1879 = vst.msk [vmem:[#allocation3 + $0xc0] sm:$0xff] %vm1854, %v1846
      %1880 = vst.msk [vmem:[#allocation3 + $0xc8] sm:$0xff] %vm1854, %v1847
      %1881 = vst.msk [vmem:[#allocation3 + $0xd0] sm:$0xff] %vm1854, %v1848
      %1882 = vst.msk [vmem:[#allocation3 + $0xd8] sm:$0xff] %vm1854, %v1849
      %1883 = vst.msk [vmem:[#allocation3 + $0xe0] sm:$0xff] %vm1854, %v1850
      %1884 = vst.msk [vmem:[#allocation3 + $0xe8] sm:$0xff] %vm1854, %v1851
      %1885 = vst.msk [vmem:[#allocation3 + $0xf0] sm:$0xff] %vm1854, %v1852
      %1886 = vst.msk [vmem:[#allocation3 + $0xf8] sm:$0xff] %vm1854, %v1853
      %v1887 = vld [vmem:[#allocation4] sm:$0xff]
      %v1888 = vld [vmem:[#allocation4 + $0x8] sm:$0xff]
      %v1889 = vld [vmem:[#allocation4 + $0x10] sm:$0xff]
      %v1890 = vld [vmem:[#allocation4 + $0x18] sm:$0xff]
      %v1891 = vld [vmem:[#allocation4 + $0x20] sm:$0xff]
      %v1892 = vld [vmem:[#allocation4 + $0x28] sm:$0xff]
      %v1893 = vld [vmem:[#allocation4 + $0x30] sm:$0xff]
      %v1894 = vld [vmem:[#allocation4 + $0x38] sm:$0xff]
      %v1895 = vld [vmem:[#allocation4 + $0x40] sm:$0xff]
      %v1896 = vld [vmem:[#allocation4 + $0x48] sm:$0xff]
      %v1897 = vld [vmem:[#allocation4 + $0x50] sm:$0xff]
      %v1898 = vld [vmem:[#allocation4 + $0x58] sm:$0xff]
      %v1899 = vld [vmem:[#allocation4 + $0x60] sm:$0xff]
      %v1900 = vld [vmem:[#allocation4 + $0x68] sm:$0xff]
      %v1901 = vld [vmem:[#allocation4 + $0x70] sm:$0xff]
      %v1902 = vld [vmem:[#allocation4 + $0x78] sm:$0xff]
      %v1903 = vld [vmem:[#allocation4 + $0x80] sm:$0xff]
      %v1904 = vld [vmem:[#allocation4 + $0x88] sm:$0xff]
      %v1905 = vld [vmem:[#allocation4 + $0x90] sm:$0xff]
      %v1906 = vld [vmem:[#allocation4 + $0x98] sm:$0xff]
      %v1907 = vld [vmem:[#allocation4 + $0xa0] sm:$0xff]
      %v1908 = vld [vmem:[#allocation4 + $0xa8] sm:$0xff]
      %v1909 = vld [vmem:[#allocation4 + $0xb0] sm:$0xff]
      %v1910 = vld [vmem:[#allocation4 + $0xb8] sm:$0xff]
      %v1911 = vld [vmem:[#allocation4 + $0xc0] sm:$0xff]
      %v1912 = vld [vmem:[#allocation4 + $0xc8] sm:$0xff]
      %v1913 = vld [vmem:[#allocation4 + $0xd0] sm:$0xff]
      %v1914 = vld [vmem:[#allocation4 + $0xd8] sm:$0xff]
      %v1915 = vld [vmem:[#allocation4 + $0xe0] sm:$0xff]
      %v1916 = vld [vmem:[#allocation4 + $0xe8] sm:$0xff]
      %v1917 = vld [vmem:[#allocation4 + $0xf0] sm:$0xff]
      %v1918 = vld [vmem:[#allocation4 + $0xf8] sm:$0xff]
      %1920 = vset.pattern.permute.xlu0 0
      %1921 = vperm.xlu0 %1920, %v1183
      %v1922 = vpop.permute.xlu0 %1921
      %1925 = vset.pattern.permute.xlu0 0
      %1926 = vperm.xlu0 %1925, %v1185
      %v1927 = vpop.permute.xlu0 %1926
      %1930 = vset.pattern.permute.xlu0 0
      %1931 = vperm.xlu0 %1930, %v1187
      %v1932 = vpop.permute.xlu0 %1931
      %1935 = vset.pattern.permute.xlu0 0
      %1936 = vperm.xlu0 %1935, %v1189
      %v1937 = vpop.permute.xlu0 %1936
      %1940 = vset.pattern.permute.xlu0 0
      %1941 = vperm.xlu0 %1940, %v1191
      %v1942 = vpop.permute.xlu0 %1941
      %1945 = vset.pattern.permute.xlu0 0
      %1946 = vperm.xlu0 %1945, %v1193
      %v1947 = vpop.permute.xlu0 %1946
      %1950 = vset.pattern.permute.xlu0 0
      %1951 = vperm.xlu0 %1950, %v1195
      %v1952 = vpop.permute.xlu0 %1951
      %1955 = vset.pattern.permute.xlu0 0
      %1956 = vperm.xlu0 %1955, %v1197
      %v1957 = vpop.permute.xlu0 %1956
      %1960 = vset.pattern.permute.xlu0 0
      %1961 = vperm.xlu0 %1960, %v1199
      %v1962 = vpop.permute.xlu0 %1961
      %1965 = vset.pattern.permute.xlu0 0
      %1966 = vperm.xlu0 %1965, %v1201
      %v1967 = vpop.permute.xlu0 %1966
      %1970 = vset.pattern.permute.xlu0 0
      %1971 = vperm.xlu0 %1970, %v1203
      %v1972 = vpop.permute.xlu0 %1971
      %1975 = vset.pattern.permute.xlu0 0
      %1976 = vperm.xlu0 %1975, %v1205
      %v1977 = vpop.permute.xlu0 %1976
      %1980 = vset.pattern.permute.xlu0 0
      %1981 = vperm.xlu0 %1980, %v1207
      %v1982 = vpop.permute.xlu0 %1981
      %1985 = vset.pattern.permute.xlu0 0
      %1986 = vperm.xlu0 %1985, %v1209
      %v1987 = vpop.permute.xlu0 %1986
      %1990 = vset.pattern.permute.xlu0 0
      %1991 = vperm.xlu0 %1990, %v1211
      %v1992 = vpop.permute.xlu0 %1991
      %1995 = vset.pattern.permute.xlu0 0
      %1996 = vperm.xlu0 %1995, %v1213
      %v1997 = vpop.permute.xlu0 %1996
      %2000 = vset.pattern.permute.xlu0 0
      %2001 = vperm.xlu0 %2000, %v1215
      %v2002 = vpop.permute.xlu0 %2001
      %2005 = vset.pattern.permute.xlu0 0
      %2006 = vperm.xlu0 %2005, %v1217
      %v2007 = vpop.permute.xlu0 %2006
      %2010 = vset.pattern.permute.xlu0 0
      %2011 = vperm.xlu0 %2010, %v1219
      %v2012 = vpop.permute.xlu0 %2011
      %2015 = vset.pattern.permute.xlu0 0
      %2016 = vperm.xlu0 %2015, %v1221
      %v2017 = vpop.permute.xlu0 %2016
      %2020 = vset.pattern.permute.xlu0 0
      %2021 = vperm.xlu0 %2020, %v1223
      %v2022 = vpop.permute.xlu0 %2021
      %2025 = vset.pattern.permute.xlu0 0
      %2026 = vperm.xlu0 %2025, %v1225
      %v2027 = vpop.permute.xlu0 %2026
      %2030 = vset.pattern.permute.xlu0 0
      %2031 = vperm.xlu0 %2030, %v1227
      %v2032 = vpop.permute.xlu0 %2031
      %2035 = vset.pattern.permute.xlu0 0
      %2036 = vperm.xlu0 %2035, %v1229
      %v2037 = vpop.permute.xlu0 %2036
      %2040 = vset.pattern.permute.xlu0 0
      %2041 = vperm.xlu0 %2040, %v1231
      %v2042 = vpop.permute.xlu0 %2041
      %2045 = vset.pattern.permute.xlu0 0
      %2046 = vperm.xlu0 %2045, %v1233
      %v2047 = vpop.permute.xlu0 %2046
      %2050 = vset.pattern.permute.xlu0 0
      %2051 = vperm.xlu0 %2050, %v1235
      %v2052 = vpop.permute.xlu0 %2051
      %2055 = vset.pattern.permute.xlu0 0
      %2056 = vperm.xlu0 %2055, %v1237
      %v2057 = vpop.permute.xlu0 %2056
      %2060 = vset.pattern.permute.xlu0 0
      %2061 = vperm.xlu0 %2060, %v1239
      %v2062 = vpop.permute.xlu0 %2061
      %2065 = vset.pattern.permute.xlu0 0
      %2066 = vperm.xlu0 %2065, %v1241
      %v2067 = vpop.permute.xlu0 %2066
      %2070 = vset.pattern.permute.xlu0 0
      %2071 = vperm.xlu0 %2070, %v1243
      %v2072 = vpop.permute.xlu0 %2071
      %2075 = vset.pattern.permute.xlu0 0
      %2076 = vperm.xlu0 %2075, %v1245
      %v2077 = vpop.permute.xlu0 %2076
      %v2079 = vmul.f32 %v1922, %v1887
      %v2080 = vmul.f32 %v1927, %v1888
      %v2081 = vmul.f32 %v1932, %v1889
      %v2082 = vmul.f32 %v1937, %v1890
      %v2083 = vmul.f32 %v1942, %v1891
      %v2084 = vmul.f32 %v1947, %v1892
      %v2085 = vmul.f32 %v1952, %v1893
      %v2086 = vmul.f32 %v1957, %v1894
      %v2087 = vmul.f32 %v1962, %v1895
      %v2088 = vmul.f32 %v1967, %v1896
      %v2089 = vmul.f32 %v1972, %v1897
      %v2090 = vmul.f32 %v1977, %v1898
      %v2091 = vmul.f32 %v1982, %v1899
      %v2092 = vmul.f32 %v1987, %v1900
      %v2093 = vmul.f32 %v1992, %v1901
      %v2094 = vmul.f32 %v1997, %v1902
      %v2095 = vmul.f32 %v2002, %v1903
      %v2096 = vmul.f32 %v2007, %v1904
      %v2097 = vmul.f32 %v2012, %v1905
      %v2098 = vmul.f32 %v2017, %v1906
      %v2099 = vmul.f32 %v2022, %v1907
      %v2100 = vmul.f32 %v2027, %v1908
      %v2101 = vmul.f32 %v2032, %v1909
      %v2102 = vmul.f32 %v2037, %v1910
      %v2103 = vmul.f32 %v2042, %v1911
      %v2104 = vmul.f32 %v2047, %v1912
      %v2105 = vmul.f32 %v2052, %v1913
      %v2106 = vmul.f32 %v2057, %v1914
      %v2107 = vmul.f32 %v2062, %v1915
      %v2108 = vmul.f32 %v2067, %v1916
      %v2109 = vmul.f32 %v2072, %v1917
      %v2110 = vmul.f32 %v2077, %v1918
      %v2143 = vunpack.c.l.b16 %v573
      %v2144 = vunpack.c.l.b16 %v574
      %v2145 = vunpack.c.l.b16 %v575
      %v2146 = vunpack.c.l.b16 %v576
      %v2147 = vunpack.c.l.b16 %v577
      %v2148 = vunpack.c.l.b16 %v578
      %v2149 = vunpack.c.l.b16 %v579
      %v2150 = vunpack.c.l.b16 %v580
      %v2151 = vunpack.c.l.b16 %v581
      %v2152 = vunpack.c.l.b16 %v582
      %v2153 = vunpack.c.l.b16 %v583
      %v2154 = vunpack.c.l.b16 %v584
      %v2155 = vunpack.c.l.b16 %v585
      %v2156 = vunpack.c.l.b16 %v586
      %v2157 = vunpack.c.l.b16 %v587
      %v2158 = vunpack.c.l.b16 %v588
      %v2159 = vunpack.c.l.b16 %v589
      %v2160 = vunpack.c.l.b16 %v590
      %v2161 = vunpack.c.l.b16 %v591
      %v2162 = vunpack.c.l.b16 %v592
      %v2163 = vunpack.c.l.b16 %v593
      %v2164 = vunpack.c.l.b16 %v594
      %v2165 = vunpack.c.l.b16 %v595
      %v2166 = vunpack.c.l.b16 %v596
      %v2167 = vunpack.c.l.b16 %v597
      %v2168 = vunpack.c.l.b16 %v598
      %v2169 = vunpack.c.l.b16 %v599
      %v2170 = vunpack.c.l.b16 %v600
      %v2171 = vunpack.c.l.b16 %v601
      %v2172 = vunpack.c.l.b16 %v602
      %v2173 = vunpack.c.l.b16 %v603
      %v2174 = vunpack.c.l.b16 %v604
      %v2175 = vpack.c.b16 %v2144, %v2143
      %v2176 = vpack.c.b16 %v2146, %v2145
      %v2177 = vpack.c.b16 %v2148, %v2147
      %v2178 = vpack.c.b16 %v2150, %v2149
      %v2179 = vpack.c.b16 %v2152, %v2151
      %v2180 = vpack.c.b16 %v2154, %v2153
      %v2181 = vpack.c.b16 %v2156, %v2155
      %v2182 = vpack.c.b16 %v2158, %v2157
      %v2183 = vpack.c.b16 %v2160, %v2159
      %v2184 = vpack.c.b16 %v2162, %v2161
      %v2185 = vpack.c.b16 %v2164, %v2163
      %v2186 = vpack.c.b16 %v2166, %v2165
      %v2187 = vpack.c.b16 %v2168, %v2167
      %v2188 = vpack.c.b16 %v2170, %v2169
      %v2189 = vpack.c.b16 %v2172, %v2171
      %v2190 = vpack.c.b16 %v2174, %v2173
      %2207 = vmatprep.subr.bf16.mxu0 0
      %2208 = vmatpush1.bf16.msra.mxu0 %v2175
      %2209 = vmatprep.subr.bf16.mxu0 0
      %2210 = vmatpush1.bf16.msra.mxu0 %v2176
      %2211 = vmatprep.subr.bf16.mxu0 0
      %2212 = vmatpush1.bf16.msra.mxu0 %v2177
      %2213 = vmatprep.subr.bf16.mxu0 0
      %2214 = vmatpush1.bf16.msra.mxu0 %v2178
      %2215 = vmatprep.subr.bf16.mxu0 0
      %2216 = vmatpush1.bf16.msra.mxu0 %v2179
      %2217 = vmatprep.subr.bf16.mxu0 0
      %2218 = vmatpush1.bf16.msra.mxu0 %v2180
      %2219 = vmatprep.subr.bf16.mxu0 0
      %2220 = vmatpush1.bf16.msra.mxu0 %v2181
      %2221 = vmatprep.subr.bf16.mxu0 0
      %2222 = vmatpush1.bf16.msra.mxu0 %v2182
      %2223 = vmatprep.subr.bf16.mxu0 0
      %2224 = vmatpush1.bf16.msra.mxu0 %v2183
      %2225 = vmatprep.subr.bf16.mxu0 0
      %2226 = vmatpush1.bf16.msra.mxu0 %v2184
      %2227 = vmatprep.subr.bf16.mxu0 0
      %2228 = vmatpush1.bf16.msra.mxu0 %v2185
      %2229 = vmatprep.subr.bf16.mxu0 0
      %2230 = vmatpush1.bf16.msra.mxu0 %v2186
      %2231 = vmatprep.subr.bf16.mxu0 0
      %2232 = vmatpush1.bf16.msra.mxu0 %v2187
      %2233 = vmatprep.subr.bf16.mxu0 0
      %2234 = vmatpush1.bf16.msra.mxu0 %v2188
      %2235 = vmatprep.subr.bf16.mxu0 0
      %2236 = vmatpush1.bf16.msra.mxu0 %v2189
      %2237 = vmatprep.subr.bf16.mxu0 0
      %2238 = vmatpush1.bf16.msra.mxu0 %v2190
      %2239 = vmatprep.mubr.bf16.mxu0 %v1507
      %2240 = vmatmul.mubr.bf16.gmra.mrb[0].mxu0 %v1504
      %v2241 = vpop.f32.mrb[0].mxu0
      %v2242 = vadd.f32 0.0, %v2241
      %v2243 = vpop.f32.mrb[0].mxu0
      %v2244 = vpop.f32.mrb[0].mxu0
      %v2245 = vadd.f32 0.0, %v2244
      %v2246 = vpop.f32.mrb[0].mxu0
      %2247 = vmatprep.mubr.bf16.mxu0 %v1513
      %2248 = vmatmul.mubr.bf16.gmra.mrb[0].mxu0 %v1510
      %v2249 = vpop.f32.mrb[0].mxu0
      %v2250 = vadd.f32 0.0, %v2249
      %v2251 = vpop.f32.mrb[0].mxu0
      %v2252 = vpop.f32.mrb[0].mxu0
      %v2253 = vadd.f32 0.0, %v2252
      %v2254 = vpop.f32.mrb[0].mxu0
      %2255 = vmatprep.mubr.bf16.mxu0 %v1519
      %2256 = vmatmul.mubr.bf16.gmra.mrb[0].mxu0 %v1516
      %v2257 = vpop.f32.mrb[0].mxu0
      %v2258 = vadd.f32 0.0, %v2257
      %v2259 = vpop.f32.mrb[0].mxu0
      %v2260 = vpop.f32.mrb[0].mxu0
      %v2261 = vadd.f32 0.0, %v2260
      %v2262 = vpop.f32.mrb[0].mxu0
      %2263 = vmatprep.mubr.bf16.mxu0 %v1525
      %2264 = vmatmul.mubr.bf16.gmra.mrb[0].mxu0 %v1522
      %v2265 = vpop.f32.mrb[0].mxu0
      %v2266 = vadd.f32 0.0, %v2265
      %v2267 = vpop.f32.mrb[0].mxu0
      %v2268 = vpop.f32.mrb[0].mxu0
      %v2269 = vadd.f32 0.0, %v2268
      %v2270 = vpop.f32.mrb[0].mxu0
      %2271 = vmatprep.mubr.bf16.mxu0 %v1531
      %2272 = vmatmul.mubr.bf16.gmra.mrb[0].mxu0 %v1528
      %v2273 = vpop.f32.mrb[0].mxu0
      %v2274 = vadd.f32 0.0, %v2273
      %v2275 = vpop.f32.mrb[0].mxu0
      %v2276 = vpop.f32.mrb[0].mxu0
      %v2277 = vadd.f32 0.0, %v2276
      %v2278 = vpop.f32.mrb[0].mxu0
      %2279 = vmatprep.mubr.bf16.mxu0 %v1537
      %2280 = vmatmul.mubr.bf16.gmra.mrb[0].mxu0 %v1534
      %v2281 = vpop.f32.mrb[0].mxu0
      %v2282 = vadd.f32 0.0, %v2281
      %v2283 = vpop.f32.mrb[0].mxu0
      %v2284 = vpop.f32.mrb[0].mxu0
      %v2285 = vadd.f32 0.0, %v2284
      %v2286 = vpop.f32.mrb[0].mxu0
      %2287 = vmatprep.mubr.bf16.mxu0 %v1543
      %2288 = vmatmul.mubr.bf16.gmra.mrb[0].mxu0 %v1540
      %v2289 = vpop.f32.mrb[0].mxu0
      %v2290 = vadd.f32 0.0, %v2289
      %v2291 = vpop.f32.mrb[0].mxu0
      %v2292 = vpop.f32.mrb[0].mxu0
      %v2293 = vadd.f32 0.0, %v2292
      %v2294 = vpop.f32.mrb[0].mxu0
      %2295 = vmatprep.mubr.bf16.mxu0 %v1549
      %2296 = vmatmul.mubr.bf16.gmra.mrb[0].mxu0 %v1546
      %v2297 = vpop.f32.mrb[0].mxu0
      %v2298 = vadd.f32 0.0, %v2297
      %v2299 = vpop.f32.mrb[0].mxu0
      %v2300 = vpop.f32.mrb[0].mxu0
      %v2301 = vadd.f32 0.0, %v2300
      %v2302 = vpop.f32.mrb[0].mxu0
      %2303 = vmatprep.mubr.bf16.mxu0 %v1555
      %2304 = vmatmul.mubr.bf16.gmra.mrb[0].mxu0 %v1552
      %v2305 = vpop.f32.mrb[0].mxu0
      %v2306 = vadd.f32 0.0, %v2305
      %v2307 = vpop.f32.mrb[0].mxu0
      %v2308 = vpop.f32.mrb[0].mxu0
      %v2309 = vadd.f32 0.0, %v2308
      %v2310 = vpop.f32.mrb[0].mxu0
      %2311 = vmatprep.mubr.bf16.mxu0 %v1561
      %2312 = vmatmul.mubr.bf16.gmra.mrb[0].mxu0 %v1558
      %v2313 = vpop.f32.mrb[0].mxu0
      %v2314 = vadd.f32 0.0, %v2313
      %v2315 = vpop.f32.mrb[0].mxu0
      %v2316 = vpop.f32.mrb[0].mxu0
      %v2317 = vadd.f32 0.0, %v2316
      %v2318 = vpop.f32.mrb[0].mxu0
      %2319 = vmatprep.mubr.bf16.mxu0 %v1567
      %2320 = vmatmul.mubr.bf16.gmra.mrb[0].mxu0 %v1564
      %v2321 = vpop.f32.mrb[0].mxu0
      %v2322 = vadd.f32 0.0, %v2321
      %v2323 = vpop.f32.mrb[0].mxu0
      %v2324 = vpop.f32.mrb[0].mxu0
      %v2325 = vadd.f32 0.0, %v2324
      %v2326 = vpop.f32.mrb[0].mxu0
      %2327 = vmatprep.mubr.bf16.mxu0 %v1573
      %2328 = vmatmul.mubr.bf16.gmra.mrb[0].mxu0 %v1570
      %v2329 = vpop.f32.mrb[0].mxu0
      %v2330 = vadd.f32 0.0, %v2329
      %v2331 = vpop.f32.mrb[0].mxu0
      %v2332 = vpop.f32.mrb[0].mxu0
      %v2333 = vadd.f32 0.0, %v2332
      %v2334 = vpop.f32.mrb[0].mxu0
      %2335 = vmatprep.mubr.bf16.mxu0 %v1579
      %2336 = vmatmul.mubr.bf16.gmra.mrb[0].mxu0 %v1576
      %v2337 = vpop.f32.mrb[0].mxu0
      %v2338 = vadd.f32 0.0, %v2337
      %v2339 = vpop.f32.mrb[0].mxu0
      %v2340 = vpop.f32.mrb[0].mxu0
      %v2341 = vadd.f32 0.0, %v2340
      %v2342 = vpop.f32.mrb[0].mxu0
      %2343 = vmatprep.mubr.bf16.mxu0 %v1585
      %2344 = vmatmul.mubr.bf16.gmra.mrb[0].mxu0 %v1582
      %v2345 = vpop.f32.mrb[0].mxu0
      %v2346 = vadd.f32 0.0, %v2345
      %v2347 = vpop.f32.mrb[0].mxu0
      %v2348 = vpop.f32.mrb[0].mxu0
      %v2349 = vadd.f32 0.0, %v2348
      %v2350 = vpop.f32.mrb[0].mxu0
      %2351 = vmatprep.mubr.bf16.mxu0 %v1591
      %2352 = vmatmul.mubr.bf16.gmra.mrb[0].mxu0 %v1588
      %v2353 = vpop.f32.mrb[0].mxu0
      %v2354 = vadd.f32 0.0, %v2353
      %v2355 = vpop.f32.mrb[0].mxu0
      %v2356 = vpop.f32.mrb[0].mxu0
      %v2357 = vadd.f32 0.0, %v2356
      %v2358 = vpop.f32.mrb[0].mxu0
      %2359 = vmatprep.mubr.bf16.mxu0 %v1597
      %2360 = vmatmul.mubr.bf16.gmra.mrb[0].mxu0 %v1594
      %v2361 = vpop.f32.mrb[0].mxu0
      %v2362 = vadd.f32 0.0, %v2361
      %v2363 = vpop.f32.mrb[0].mxu0
      %v2364 = vpop.f32.mrb[0].mxu0
      %v2365 = vadd.f32 0.0, %v2364
      %v2366 = vpop.f32.mrb[0].mxu0
      %2367 = vdwg.mxu0
      %v2368 = vadd.f32 %v2079, %v2242
      %v2369 = vadd.f32 %v2080, %v2245
      %v2370 = vadd.f32 %v2081, %v2250
      %v2371 = vadd.f32 %v2082, %v2253
      %v2372 = vadd.f32 %v2083, %v2258
      %v2373 = vadd.f32 %v2084, %v2261
      %v2374 = vadd.f32 %v2085, %v2266
      %v2375 = vadd.f32 %v2086, %v2269
      %v2376 = vadd.f32 %v2087, %v2274
      %v2377 = vadd.f32 %v2088, %v2277
      %v2378 = vadd.f32 %v2089, %v2282
      %v2379 = vadd.f32 %v2090, %v2285
      %v2380 = vadd.f32 %v2091, %v2290
      %v2381 = vadd.f32 %v2092, %v2293
      %v2382 = vadd.f32 %v2093, %v2298
      %v2383 = vadd.f32 %v2094, %v2301
      %v2384 = vadd.f32 %v2095, %v2306
      %v2385 = vadd.f32 %v2096, %v2309
      %v2386 = vadd.f32 %v2097, %v2314
      %v2387 = vadd.f32 %v2098, %v2317
      %v2388 = vadd.f32 %v2099, %v2322
      %v2389 = vadd.f32 %v2100, %v2325
      %v2390 = vadd.f32 %v2101, %v2330
      %v2391 = vadd.f32 %v2102, %v2333
      %v2392 = vadd.f32 %v2103, %v2338
      %v2393 = vadd.f32 %v2104, %v2341
      %v2394 = vadd.f32 %v2105, %v2346
      %v2395 = vadd.f32 %v2106, %v2349
      %v2396 = vadd.f32 %v2107, %v2354
      %v2397 = vadd.f32 %v2108, %v2357
      %v2398 = vadd.f32 %v2109, %v2362
      %v2399 = vadd.f32 %v2110, %v2365
      %2400 = vst [vmem:[#allocation4] sm:$0xff] %v2368
      %2401 = vst [vmem:[#allocation4 + $0x8] sm:$0xff] %v2369
      %2402 = vst [vmem:[#allocation4 + $0x10] sm:$0xff] %v2370
      %2403 = vst [vmem:[#allocation4 + $0x18] sm:$0xff] %v2371
      %2404 = vst [vmem:[#allocation4 + $0x20] sm:$0xff] %v2372
      %2405 = vst [vmem:[#allocation4 + $0x28] sm:$0xff] %v2373
      %2406 = vst [vmem:[#allocation4 + $0x30] sm:$0xff] %v2374
      %2407 = vst [vmem:[#allocation4 + $0x38] sm:$0xff] %v2375
      %2408 = vst [vmem:[#allocation4 + $0x40] sm:$0xff] %v2376
      %2409 = vst [vmem:[#allocation4 + $0x48] sm:$0xff] %v2377
      %2410 = vst [vmem:[#allocation4 + $0x50] sm:$0xff] %v2378
      %2411 = vst [vmem:[#allocation4 + $0x58] sm:$0xff] %v2379
      %2412 = vst [vmem:[#allocation4 + $0x60] sm:$0xff] %v2380
      %2413 = vst [vmem:[#allocation4 + $0x68] sm:$0xff] %v2381
      %2414 = vst [vmem:[#allocation4 + $0x70] sm:$0xff] %v2382
      %2415 = vst [vmem:[#allocation4 + $0x78] sm:$0xff] %v2383
      %2416 = vst [vmem:[#allocation4 + $0x80] sm:$0xff] %v2384
      %2417 = vst [vmem:[#allocation4 + $0x88] sm:$0xff] %v2385
      %2418 = vst [vmem:[#allocation4 + $0x90] sm:$0xff] %v2386
      %2419 = vst [vmem:[#allocation4 + $0x98] sm:$0xff] %v2387
      %2420 = vst [vmem:[#allocation4 + $0xa0] sm:$0xff] %v2388
      %2421 = vst [vmem:[#allocation4 + $0xa8] sm:$0xff] %v2389
      %2422 = vst [vmem:[#allocation4 + $0xb0] sm:$0xff] %v2390
      %2423 = vst [vmem:[#allocation4 + $0xb8] sm:$0xff] %v2391
      %2424 = vst [vmem:[#allocation4 + $0xc0] sm:$0xff] %v2392
      %2425 = vst [vmem:[#allocation4 + $0xc8] sm:$0xff] %v2393
      %2426 = vst [vmem:[#allocation4 + $0xd0] sm:$0xff] %v2394
      %2427 = vst [vmem:[#allocation4 + $0xd8] sm:$0xff] %v2395
      %2428 = vst [vmem:[#allocation4 + $0xe0] sm:$0xff] %v2396
      %2429 = vst [vmem:[#allocation4 + $0xe8] sm:$0xff] %v2397
      %2430 = vst [vmem:[#allocation4 + $0xf0] sm:$0xff] %v2398
      %2431 = vst [vmem:[#allocation4 + $0xf8] sm:$0xff] %v2399
      %2432 = vst.msk [vmem:[#allocation2] sm:$0xff] %vm1854, %v1118
      %2433 = vst.msk [vmem:[#allocation2 + $0x8] sm:$0xff] %vm1854, %v1119
      %2434 = vst.msk [vmem:[#allocation2 + $0x10] sm:$0xff] %vm1854, %v1120
      %2435 = vst.msk [vmem:[#allocation2 + $0x18] sm:$0xff] %vm1854, %v1121
      %2436 = vst.msk [vmem:[#allocation2 + $0x20] sm:$0xff] %vm1854, %v1122
      %2437 = vst.msk [vmem:[#allocation2 + $0x28] sm:$0xff] %vm1854, %v1123
      %2438 = vst.msk [vmem:[#allocation2 + $0x30] sm:$0xff] %vm1854, %v1124
      %2439 = vst.msk [vmem:[#allocation2 + $0x38] sm:$0xff] %vm1854, %v1125
      %2440 = vst.msk [vmem:[#allocation2 + $0x40] sm:$0xff] %vm1854, %v1126
      %2441 = vst.msk [vmem:[#allocation2 + $0x48] sm:$0xff] %vm1854, %v1127
      %2442 = vst.msk [vmem:[#allocation2 + $0x50] sm:$0xff] %vm1854, %v1128
      %2443 = vst.msk [vmem:[#allocation2 + $0x58] sm:$0xff] %vm1854, %v1129
      %2444 = vst.msk [vmem:[#allocation2 + $0x60] sm:$0xff] %vm1854, %v1130
      %2445 = vst.msk [vmem:[#allocation2 + $0x68] sm:$0xff] %vm1854, %v1131
      %2446 = vst.msk [vmem:[#allocation2 + $0x70] sm:$0xff] %vm1854, %v1132
      %2447 = vst.msk [vmem:[#allocation2 + $0x78] sm:$0xff] %vm1854, %v1133
      %2448 = vst.msk [vmem:[#allocation2 + $0x80] sm:$0xff] %vm1854, %v1134
      %2449 = vst.msk [vmem:[#allocation2 + $0x88] sm:$0xff] %vm1854, %v1135
      %2450 = vst.msk [vmem:[#allocation2 + $0x90] sm:$0xff] %vm1854, %v1136
      %2451 = vst.msk [vmem:[#allocation2 + $0x98] sm:$0xff] %vm1854, %v1137
      %2452 = vst.msk [vmem:[#allocation2 + $0xa0] sm:$0xff] %vm1854, %v1138
      %2453 = vst.msk [vmem:[#allocation2 + $0xa8] sm:$0xff] %vm1854, %v1139
      %2454 = vst.msk [vmem:[#allocation2 + $0xb0] sm:$0xff] %vm1854, %v1140
      %2455 = vst.msk [vmem:[#allocation2 + $0xb8] sm:$0xff] %vm1854, %v1141
      %2456 = vst.msk [vmem:[#allocation2 + $0xc0] sm:$0xff] %vm1854, %v1142
      %2457 = vst.msk [vmem:[#allocation2 + $0xc8] sm:$0xff] %vm1854, %v1143
      %2458 = vst.msk [vmem:[#allocation2 + $0xd0] sm:$0xff] %vm1854, %v1144
      %2459 = vst.msk [vmem:[#allocation2 + $0xd8] sm:$0xff] %vm1854, %v1145
      %2460 = vst.msk [vmem:[#allocation2 + $0xe0] sm:$0xff] %vm1854, %v1146
      %2461 = vst.msk [vmem:[#allocation2 + $0xe8] sm:$0xff] %vm1854, %v1147
      %2462 = vst.msk [vmem:[#allocation2 + $0xf0] sm:$0xff] %vm1854, %v1148
      %2463 = vst.msk [vmem:[#allocation2 + $0xf8] sm:$0xff] %vm1854, %v1149
      // Predicated region
      $region37: #{_lambda_.1} parent=31 // pred_check
        %p2464 = pneg %p408
      $region38: #{_lambda_.1} parent=31 // pred_check_branch
        %2466 = sbr.rel (%p2464) target = $region40
      $region39: #{_lambda_.1} parent=31 // pred_region
        %v2467 = vld [vmem:[#allocation3] sm:$0xff]
        %v2468 = vld [vmem:[#allocation3 + $0x8] sm:$0xff]
        %v2469 = vld [vmem:[#allocation3 + $0x10] sm:$0xff]
        %v2470 = vld [vmem:[#allocation3 + $0x18] sm:$0xff]
        %v2471 = vld [vmem:[#allocation3 + $0x20] sm:$0xff]
        %v2472 = vld [vmem:[#allocation3 + $0x28] sm:$0xff]
        %v2473 = vld [vmem:[#allocation3 + $0x30] sm:$0xff]
        %v2474 = vld [vmem:[#allocation3 + $0x38] sm:$0xff]
        %v2475 = vld [vmem:[#allocation3 + $0x40] sm:$0xff]
        %v2476 = vld [vmem:[#allocation3 + $0x48] sm:$0xff]
        %v2477 = vld [vmem:[#allocation3 + $0x50] sm:$0xff]
        %v2478 = vld [vmem:[#allocation3 + $0x58] sm:$0xff]
        %v2479 = vld [vmem:[#allocation3 + $0x60] sm:$0xff]
        %v2480 = vld [vmem:[#allocation3 + $0x68] sm:$0xff]
        %v2481 = vld [vmem:[#allocation3 + $0x70] sm:$0xff]
        %v2482 = vld [vmem:[#allocation3 + $0x78] sm:$0xff]
        %v2483 = vld [vmem:[#allocation3 + $0x80] sm:$0xff]
        %v2484 = vld [vmem:[#allocation3 + $0x88] sm:$0xff]
        %v2485 = vld [vmem:[#allocation3 + $0x90] sm:$0xff]
        %v2486 = vld [vmem:[#allocation3 + $0x98] sm:$0xff]
        %v2487 = vld [vmem:[#allocation3 + $0xa0] sm:$0xff]
        %v2488 = vld [vmem:[#allocation3 + $0xa8] sm:$0xff]
        %v2489 = vld [vmem:[#allocation3 + $0xb0] sm:$0xff]
        %v2490 = vld [vmem:[#allocation3 + $0xb8] sm:$0xff]
        %v2491 = vld [vmem:[#allocation3 + $0xc0] sm:$0xff]
        %v2492 = vld [vmem:[#allocation3 + $0xc8] sm:$0xff]
        %v2493 = vld [vmem:[#allocation3 + $0xd0] sm:$0xff]
        %v2494 = vld [vmem:[#allocation3 + $0xd8] sm:$0xff]
        %v2495 = vld [vmem:[#allocation3 + $0xe0] sm:$0xff]
        %v2496 = vld [vmem:[#allocation3 + $0xe8] sm:$0xff]
        %v2497 = vld [vmem:[#allocation3 + $0xf0] sm:$0xff]
        %v2498 = vld [vmem:[#allocation3 + $0xf8] sm:$0xff]
        %v2499 = vrcp.pop %v2467
        %v2500 = vrcp.pop %v2468
        %v2501 = vrcp.pop %v2469
        %v2502 = vrcp.pop %v2470
        %v2503 = vrcp.pop %v2471
        %v2504 = vrcp.pop %v2472
        %v2505 = vrcp.pop %v2473
        %v2506 = vrcp.pop %v2474
        %v2507 = vrcp.pop %v2475
        %v2508 = vrcp.pop %v2476
        %v2509 = vrcp.pop %v2477
        %v2510 = vrcp.pop %v2478
        %v2511 = vrcp.pop %v2479
        %v2512 = vrcp.pop %v2480
        %v2513 = vrcp.pop %v2481
        %v2514 = vrcp.pop %v2482
        %v2515 = vrcp.pop %v2483
        %v2516 = vrcp.pop %v2484
        %v2517 = vrcp.pop %v2485
        %v2518 = vrcp.pop %v2486
        %v2519 = vrcp.pop %v2487
        %v2520 = vrcp.pop %v2488
        %v2521 = vrcp.pop %v2489
        %v2522 = vrcp.pop %v2490
        %v2523 = vrcp.pop %v2491
        %v2524 = vrcp.pop %v2492
        %v2525 = vrcp.pop %v2493
        %v2526 = vrcp.pop %v2494
        %v2527 = vrcp.pop %v2495
        %v2528 = vrcp.pop %v2496
        %v2529 = vrcp.pop %v2497
        %v2530 = vrcp.pop %v2498
        %v2531 = vld [vmem:[#allocation4] sm:$0xff]
        %v2532 = vld [vmem:[#allocation4 + $0x8] sm:$0xff]
        %v2533 = vld [vmem:[#allocation4 + $0x10] sm:$0xff]
        %v2534 = vld [vmem:[#allocation4 + $0x18] sm:$0xff]
        %v2535 = vld [vmem:[#allocation4 + $0x20] sm:$0xff]
        %v2536 = vld [vmem:[#allocation4 + $0x28] sm:$0xff]
        %v2537 = vld [vmem:[#allocation4 + $0x30] sm:$0xff]
        %v2538 = vld [vmem:[#allocation4 + $0x38] sm:$0xff]
        %v2539 = vld [vmem:[#allocation4 + $0x40] sm:$0xff]
        %v2540 = vld [vmem:[#allocation4 + $0x48] sm:$0xff]
        %v2541 = vld [vmem:[#allocation4 + $0x50] sm:$0xff]
        %v2542 = vld [vmem:[#allocation4 + $0x58] sm:$0xff]
        %v2543 = vld [vmem:[#allocation4 + $0x60] sm:$0xff]
        %v2544 = vld [vmem:[#allocation4 + $0x68] sm:$0xff]
        %v2545 = vld [vmem:[#allocation4 + $0x70] sm:$0xff]
        %v2546 = vld [vmem:[#allocation4 + $0x78] sm:$0xff]
        %v2547 = vld [vmem:[#allocation4 + $0x80] sm:$0xff]
        %v2548 = vld [vmem:[#allocation4 + $0x88] sm:$0xff]
        %v2549 = vld [vmem:[#allocation4 + $0x90] sm:$0xff]
        %v2550 = vld [vmem:[#allocation4 + $0x98] sm:$0xff]
        %v2551 = vld [vmem:[#allocation4 + $0xa0] sm:$0xff]
        %v2552 = vld [vmem:[#allocation4 + $0xa8] sm:$0xff]
        %v2553 = vld [vmem:[#allocation4 + $0xb0] sm:$0xff]
        %v2554 = vld [vmem:[#allocation4 + $0xb8] sm:$0xff]
        %v2555 = vld [vmem:[#allocation4 + $0xc0] sm:$0xff]
        %v2556 = vld [vmem:[#allocation4 + $0xc8] sm:$0xff]
        %v2557 = vld [vmem:[#allocation4 + $0xd0] sm:$0xff]
        %v2558 = vld [vmem:[#allocation4 + $0xd8] sm:$0xff]
        %v2559 = vld [vmem:[#allocation4 + $0xe0] sm:$0xff]
        %v2560 = vld [vmem:[#allocation4 + $0xe8] sm:$0xff]
        %v2561 = vld [vmem:[#allocation4 + $0xf0] sm:$0xff]
        %v2562 = vld [vmem:[#allocation4 + $0xf8] sm:$0xff]
        %2564 = vset.pattern.permute.xlu0 0
        %2565 = vperm.xlu0 %2564, %v2499
        %v2566 = vpop.permute.xlu0 %2565
        %2569 = vset.pattern.permute.xlu0 0
        %2570 = vperm.xlu0 %2569, %v2500
        %v2571 = vpop.permute.xlu0 %2570
        %2574 = vset.pattern.permute.xlu0 0
        %2575 = vperm.xlu0 %2574, %v2501
        %v2576 = vpop.permute.xlu0 %2575
        %2579 = vset.pattern.permute.xlu0 0
        %2580 = vperm.xlu0 %2579, %v2502
        %v2581 = vpop.permute.xlu0 %2580
        %2584 = vset.pattern.permute.xlu0 0
        %2585 = vperm.xlu0 %2584, %v2503
        %v2586 = vpop.permute.xlu0 %2585
        %2589 = vset.pattern.permute.xlu0 0
        %2590 = vperm.xlu0 %2589, %v2504
        %v2591 = vpop.permute.xlu0 %2590
        %2594 = vset.pattern.permute.xlu0 0
        %2595 = vperm.xlu0 %2594, %v2505
        %v2596 = vpop.permute.xlu0 %2595
        %2599 = vset.pattern.permute.xlu0 0
        %2600 = vperm.xlu0 %2599, %v2506
        %v2601 = vpop.permute.xlu0 %2600
        %2604 = vset.pattern.permute.xlu0 0
        %2605 = vperm.xlu0 %2604, %v2507
        %v2606 = vpop.permute.xlu0 %2605
        %2609 = vset.pattern.permute.xlu0 0
        %2610 = vperm.xlu0 %2609, %v2508
        %v2611 = vpop.permute.xlu0 %2610
        %2614 = vset.pattern.permute.xlu0 0
        %2615 = vperm.xlu0 %2614, %v2509
        %v2616 = vpop.permute.xlu0 %2615
        %2619 = vset.pattern.permute.xlu0 0
        %2620 = vperm.xlu0 %2619, %v2510
        %v2621 = vpop.permute.xlu0 %2620
        %2624 = vset.pattern.permute.xlu0 0
        %2625 = vperm.xlu0 %2624, %v2511
        %v2626 = vpop.permute.xlu0 %2625
        %2629 = vset.pattern.permute.xlu0 0
        %2630 = vperm.xlu0 %2629, %v2512
        %v2631 = vpop.permute.xlu0 %2630
        %2634 = vset.pattern.permute.xlu0 0
        %2635 = vperm.xlu0 %2634, %v2513
        %v2636 = vpop.permute.xlu0 %2635
        %2639 = vset.pattern.permute.xlu0 0
        %2640 = vperm.xlu0 %2639, %v2514
        %v2641 = vpop.permute.xlu0 %2640
        %2644 = vset.pattern.permute.xlu0 0
        %2645 = vperm.xlu0 %2644, %v2515
        %v2646 = vpop.permute.xlu0 %2645
        %2649 = vset.pattern.permute.xlu0 0
        %2650 = vperm.xlu0 %2649, %v2516
        %v2651 = vpop.permute.xlu0 %2650
        %2654 = vset.pattern.permute.xlu0 0
        %2655 = vperm.xlu0 %2654, %v2517
        %v2656 = vpop.permute.xlu0 %2655
        %2659 = vset.pattern.permute.xlu0 0
        %2660 = vperm.xlu0 %2659, %v2518
        %v2661 = vpop.permute.xlu0 %2660
        %2664 = vset.pattern.permute.xlu0 0
        %2665 = vperm.xlu0 %2664, %v2519
        %v2666 = vpop.permute.xlu0 %2665
        %2669 = vset.pattern.permute.xlu0 0
        %2670 = vperm.xlu0 %2669, %v2520
        %v2671 = vpop.permute.xlu0 %2670
        %2674 = vset.pattern.permute.xlu0 0
        %2675 = vperm.xlu0 %2674, %v2521
        %v2676 = vpop.permute.xlu0 %2675
        %2679 = vset.pattern.permute.xlu0 0
        %2680 = vperm.xlu0 %2679, %v2522
        %v2681 = vpop.permute.xlu0 %2680
        %2684 = vset.pattern.permute.xlu0 0
        %2685 = vperm.xlu0 %2684, %v2523
        %v2686 = vpop.permute.xlu0 %2685
        %2689 = vset.pattern.permute.xlu0 0
        %2690 = vperm.xlu0 %2689, %v2524
        %v2691 = vpop.permute.xlu0 %2690
        %2694 = vset.pattern.permute.xlu0 0
        %2695 = vperm.xlu0 %2694, %v2525
        %v2696 = vpop.permute.xlu0 %2695
        %2699 = vset.pattern.permute.xlu0 0
        %2700 = vperm.xlu0 %2699, %v2526
        %v2701 = vpop.permute.xlu0 %2700
        %2704 = vset.pattern.permute.xlu0 0
        %2705 = vperm.xlu0 %2704, %v2527
        %v2706 = vpop.permute.xlu0 %2705
        %2709 = vset.pattern.permute.xlu0 0
        %2710 = vperm.xlu0 %2709, %v2528
        %v2711 = vpop.permute.xlu0 %2710
        %2714 = vset.pattern.permute.xlu0 0
        %2715 = vperm.xlu0 %2714, %v2529
        %v2716 = vpop.permute.xlu0 %2715
        %2719 = vset.pattern.permute.xlu0 0
        %2720 = vperm.xlu0 %2719, %v2530
        %v2721 = vpop.permute.xlu0 %2720
        %v2723 = vmul.f32 %v2531, %v2566
        %v2724 = vmul.f32 %v2532, %v2571
        %v2725 = vmul.f32 %v2533, %v2576
        %v2726 = vmul.f32 %v2534, %v2581
        %v2727 = vmul.f32 %v2535, %v2586
        %v2728 = vmul.f32 %v2536, %v2591
        %v2729 = vmul.f32 %v2537, %v2596
        %v2730 = vmul.f32 %v2538, %v2601
        %v2731 = vmul.f32 %v2539, %v2606
        %v2732 = vmul.f32 %v2540, %v2611
        %v2733 = vmul.f32 %v2541, %v2616
        %v2734 = vmul.f32 %v2542, %v2621
        %v2735 = vmul.f32 %v2543, %v2626
        %v2736 = vmul.f32 %v2544, %v2631
        %v2737 = vmul.f32 %v2545, %v2636
        %v2738 = vmul.f32 %v2546, %v2641
        %v2739 = vmul.f32 %v2547, %v2646
        %v2740 = vmul.f32 %v2548, %v2651
        %v2741 = vmul.f32 %v2549, %v2656
        %v2742 = vmul.f32 %v2550, %v2661
        %v2743 = vmul.f32 %v2551, %v2666
        %v2744 = vmul.f32 %v2552, %v2671
        %v2745 = vmul.f32 %v2553, %v2676
        %v2746 = vmul.f32 %v2554, %v2681
        %v2747 = vmul.f32 %v2555, %v2686
        %v2748 = vmul.f32 %v2556, %v2691
        %v2749 = vmul.f32 %v2557, %v2696
        %v2750 = vmul.f32 %v2558, %v2701
        %v2751 = vmul.f32 %v2559, %v2706
        %v2752 = vmul.f32 %v2560, %v2711
        %v2753 = vmul.f32 %v2561, %v2716
        %v2754 = vmul.f32 %v2562, %v2721
        %v2755 = vpack.c.bf16 %v2724, %v2723
        %v2756 = vpack.c.bf16 %v2726, %v2725
        %v2757 = vpack.c.bf16 %v2728, %v2727
        %v2758 = vpack.c.bf16 %v2730, %v2729
        %v2759 = vpack.c.bf16 %v2732, %v2731
        %v2760 = vpack.c.bf16 %v2734, %v2733
        %v2761 = vpack.c.bf16 %v2736, %v2735
        %v2762 = vpack.c.bf16 %v2738, %v2737
        %v2763 = vpack.c.bf16 %v2740, %v2739
        %v2764 = vpack.c.bf16 %v2742, %v2741
        %v2765 = vpack.c.bf16 %v2744, %v2743
        %v2766 = vpack.c.bf16 %v2746, %v2745
        %v2767 = vpack.c.bf16 %v2748, %v2747
        %v2768 = vpack.c.bf16 %v2750, %v2749
        %v2769 = vpack.c.bf16 %v2752, %v2751
        %v2770 = vpack.c.bf16 %v2754, %v2753
        %v2787 = vunpack.c.l.b16 %v2755
        %v2788 = vunpack.c.h.b16 %v2755
        %v2789 = vunpack.c.l.b16 %v2756
        %v2790 = vunpack.c.h.b16 %v2756
        %v2791 = vunpack.c.l.b16 %v2757
        %v2792 = vunpack.c.h.b16 %v2757
        %v2793 = vunpack.c.l.b16 %v2758
        %v2794 = vunpack.c.h.b16 %v2758
        %v2795 = vunpack.c.l.b16 %v2759
        %v2796 = vunpack.c.h.b16 %v2759
        %v2797 = vunpack.c.l.b16 %v2760
        %v2798 = vunpack.c.h.b16 %v2760
        %v2799 = vunpack.c.l.b16 %v2761
        %v2800 = vunpack.c.h.b16 %v2761
        %v2801 = vunpack.c.l.b16 %v2762
        %v2802 = vunpack.c.h.b16 %v2762
        %v2803 = vunpack.c.l.b16 %v2763
        %v2804 = vunpack.c.h.b16 %v2763
        %v2805 = vunpack.c.l.b16 %v2764
        %v2806 = vunpack.c.h.b16 %v2764
        %v2807 = vunpack.c.l.b16 %v2765
        %v2808 = vunpack.c.h.b16 %v2765
        %v2809 = vunpack.c.l.b16 %v2766
        %v2810 = vunpack.c.h.b16 %v2766
        %v2811 = vunpack.c.l.b16 %v2767
        %v2812 = vunpack.c.h.b16 %v2767
        %v2813 = vunpack.c.l.b16 %v2768
        %v2814 = vunpack.c.h.b16 %v2768
        %v2815 = vunpack.c.l.b16 %v2769
        %v2816 = vunpack.c.h.b16 %v2769
        %v2817 = vunpack.c.l.b16 %v2770
        %v2818 = vunpack.c.h.b16 %v2770
        %v2819 = vpack.c.b16 %v2787, %v2787
        %v2820 = vpack.c.b16 %v2788, %v2788
        %v2821 = vpack.c.b16 %v2789, %v2789
        %v2822 = vpack.c.b16 %v2790, %v2790
        %v2823 = vpack.c.b16 %v2791, %v2791
        %v2824 = vpack.c.b16 %v2792, %v2792
        %v2825 = vpack.c.b16 %v2793, %v2793
        %v2826 = vpack.c.b16 %v2794, %v2794
        %v2827 = vpack.c.b16 %v2795, %v2795
        %v2828 = vpack.c.b16 %v2796, %v2796
        %v2829 = vpack.c.b16 %v2797, %v2797
        %v2830 = vpack.c.b16 %v2798, %v2798
        %v2831 = vpack.c.b16 %v2799, %v2799
        %v2832 = vpack.c.b16 %v2800, %v2800
        %v2833 = vpack.c.b16 %v2801, %v2801
        %v2834 = vpack.c.b16 %v2802, %v2802
        %v2835 = vpack.c.b16 %v2803, %v2803
        %v2836 = vpack.c.b16 %v2804, %v2804
        %v2837 = vpack.c.b16 %v2805, %v2805
        %v2838 = vpack.c.b16 %v2806, %v2806
        %v2839 = vpack.c.b16 %v2807, %v2807
        %v2840 = vpack.c.b16 %v2808, %v2808
        %v2841 = vpack.c.b16 %v2809, %v2809
        %v2842 = vpack.c.b16 %v2810, %v2810
        %v2843 = vpack.c.b16 %v2811, %v2811
        %v2844 = vpack.c.b16 %v2812, %v2812
        %v2845 = vpack.c.b16 %v2813, %v2813
        %v2846 = vpack.c.b16 %v2814, %v2814
        %v2847 = vpack.c.b16 %v2815, %v2815
        %v2848 = vpack.c.b16 %v2816, %v2816
        %v2849 = vpack.c.b16 %v2817, %v2817
        %v2850 = vpack.c.b16 %v2818, %v2818
        %2883 = vst [vmem:[%s405] sm:$0xf] %v2819
        %2884 = vst [vmem:[%s405 + $0x4] sm:$0xf] %v2820
        %2885 = vst [vmem:[%s405 + $0x8] sm:$0xf] %v2821
        %2886 = vst [vmem:[%s405 + $0xc] sm:$0xf] %v2822
        %2887 = vst [vmem:[%s405 + $0x10] sm:$0xf] %v2823
        %2888 = vst [vmem:[%s405 + $0x14] sm:$0xf] %v2824
        %2889 = vst [vmem:[%s405 + $0x18] sm:$0xf] %v2825
        %2890 = vst [vmem:[%s405 + $0x1c] sm:$0xf] %v2826
        %2891 = vst [vmem:[%s405 + $0x20] sm:$0xf] %v2827
        %2892 = vst [vmem:[%s405 + $0x24] sm:$0xf] %v2828
        %2893 = vst [vmem:[%s405 + $0x28] sm:$0xf] %v2829
        %2894 = vst [vmem:[%s405 + $0x2c] sm:$0xf] %v2830
        %2895 = vst [vmem:[%s405 + $0x30] sm:$0xf] %v2831
        %2896 = vst [vmem:[%s405 + $0x34] sm:$0xf] %v2832
        %2897 = vst [vmem:[%s405 + $0x38] sm:$0xf] %v2833
        %2898 = vst [vmem:[%s405 + $0x3c] sm:$0xf] %v2834
        %2899 = vst [vmem:[%s405 + $0x40] sm:$0xf] %v2835
        %2900 = vst [vmem:[%s405 + $0x44] sm:$0xf] %v2836
        %2901 = vst [vmem:[%s405 + $0x48] sm:$0xf] %v2837
        %2902 = vst [vmem:[%s405 + $0x4c] sm:$0xf] %v2838
        %2903 = vst [vmem:[%s405 + $0x50] sm:$0xf] %v2839
        %2904 = vst [vmem:[%s405 + $0x54] sm:$0xf] %v2840
        %2905 = vst [vmem:[%s405 + $0x58] sm:$0xf] %v2841
        %2906 = vst [vmem:[%s405 + $0x5c] sm:$0xf] %v2842
        %2907 = vst [vmem:[%s405 + $0x60] sm:$0xf] %v2843
        %2908 = vst [vmem:[%s405 + $0x64] sm:$0xf] %v2844
        %2909 = vst [vmem:[%s405 + $0x68] sm:$0xf] %v2845
        %2910 = vst [vmem:[%s405 + $0x6c] sm:$0xf] %v2846
        %2911 = vst [vmem:[%s405 + $0x70] sm:$0xf] %v2847
        %2912 = vst [vmem:[%s405 + $0x74] sm:$0xf] %v2848
        %2913 = vst [vmem:[%s405 + $0x78] sm:$0xf] %v2849
        %2914 = vst [vmem:[%s405 + $0x7c] sm:$0xf] %v2850
      $region40: #{_lambda_.1} parent=31 // pred_fallthru
        _
      %s2915 = smul.u32 32, %s24
      %p2916 = scmp.lt.s32.totalorder %s21, 1
      %s2917 = scalar_select %p2916, %s21, 1
      %p2918 = scmp.lt.s32.totalorder %s22, 1
      %s2919 = scalar_select %p2918, %s22, 1
      %p2920 = scmp.lt.s32.totalorder %s23, 1
      %s2921 = scalar_select %p2920, %s23, 1
      %p2922 = scmp.lt.s32.totalorder %s2915, 31
      %s2923 = scalar_select %p2922, %s2915, 31
      %s2924 = smul.addr %s2921, 32
      %s2925 = sadd.s32 %s2923, %s2924
      %s2926 = smul.addr %s2919, 64
      %s2927 = sadd.s32 %s2925, %s2926
      %s2928 = smul.addr %s2917, 128
      %s2929 = sadd.s32 %s2927, %s2928
      %s2930 = smul.addr %s2929, 4
      %s2931 = scalar_lea.vmem %s3, %s2930
      // Predicated region
      $region41: #{_lambda_.1} parent=31 // pred_check
        %p2932 = pneg %p167
      $region42: #{_lambda_.1} parent=31 // pred_check_branch
        %2934 = sbr.rel (%p2932) target = $region44
      $region43: #{_lambda_.1} parent=31 // pred_region
        %s2935 = smul.u32 32, %s24
      $region44: #{_lambda_.1} parent=31 // pred_fallthru
        _
    $region32: #{_lambda_.1} parent=5 // pred_fallthru
      _
    %p2936 = scmp.le.s32.totalorder 2, %s9
    // Predicated region
    $region45: #{_lambda_.1} parent=5 // pred_check
      %p2937 = pneg %p2936
    $region46: #{_lambda_.1} parent=5 // pred_check_branch
      %2939 = sbr.rel (%p2937) target = $region48
    $region47: #{_lambda_.1} parent=5 // pred_region
      %s2940 = ssub.s32 %s9, 2
      // Predicated region
      $region49: #{_lambda_.1} parent=47 // pred_check
        %p2941 = pneg %p173
      $region50: #{_lambda_.1} parent=47 // pred_check_branch
        %2943 = sbr.rel (%p2941) target = $region52
      $region51: #{_lambda_.1} parent=47 // pred_region
        %s2944 = smul.u32 32, %s29
        %p2945 = scmp.lt.s32.totalorder %s26, 1
        %s2946 = scalar_select %p2945, %s26, 1
        %p2947 = scmp.lt.s32.totalorder %s27, 1
        %s2948 = scalar_select %p2947, %s27, 1
        %p2949 = scmp.lt.s32.totalorder %s28, 1
        %s2950 = scalar_select %p2949, %s28, 1
        %p2951 = scmp.lt.s32.totalorder %s2944, 31
        %s2952 = scalar_select %p2951, %s2944, 31
        %s2953 = smul.addr %s2950, 32
        %s2954 = sadd.s32 %s2952, %s2953
        %s2955 = smul.addr %s2948, 64
        %s2956 = sadd.s32 %s2954, %s2955
        %s2957 = smul.addr %s2946, 128
        %s2958 = sadd.s32 %s2956, %s2957
        %s2959 = smul.addr %s2958, 4
        %s2960 = scalar_lea.vmem %s3, %s2959
      $region52: #{_lambda_.1} parent=47 // pred_fallthru
        _
    $region48: #{_lambda_.1} parent=5 // pred_fallthru
      _
  $region6: #{_lambda_.1} parent=0 // loop_footer
    %s13 = sadd.s32 1, %s9
  $region7: #{_lambda_.1} parent=0 // loop_footer_branch
    %8 = sbr.rel target = $region3
  $region8: #{_lambda_.1} parent=0 // loop_exit
    _

</llo_original>
